<compile_context>
chip_gen: v7x
topology: tpu7x:2x2x1
jax: 0.10.0
libtpu: 0.0.40
codegen_flags: <defaults>
</compile_context>

<pallas_src>
import functools

import jax
import jax.numpy as jnp
from jax.experimental import pallas as pl
from jax.experimental.pallas import tpu as pltpu

MATMUL_DTYPE = jnp.bfloat16   # bf16 MXU inputs, f32 accumulation


def _round_up(x, m):
    return ((x + m - 1) // m) * m


def _vmem_capacity_bytes():
    try:
        return int(pltpu.get_tpu_info().vmem_capacity_bytes)
    except Exception:
        return 64 * 1024 * 1024          # conservative default (v7x per-TC VMEM)


def _pick_tile_m(M, T_pad, T_out, C_in, C_out, in_bytes, budget_bytes):
    """Largest M-tile (multiple of 8) whose per-step VMEM footprint fits the budget."""
    lane = 128
    cin_l = _round_up(C_in, lane)
    cout_l = _round_up(C_out, lane)
    tpad_s = _round_up(T_pad, 16)        # sub-32-bit dtypes pack along sublanes
    tout_s = _round_up(T_out, 8)
    per_row = (2 * tpad_s * cin_l * in_bytes      # x tile, double-buffered
               + 2 * tout_s * cin_l * in_bytes    # live tap slices
               + 4 * tout_s * cout_l * 4)         # f32 acc + double-buffered out
    tm = budget_bytes // max(per_row, 1)
    tm = max(8, min(2048, (tm // 8) * 8))
    if M >= 16:                           # keep >= 2 tiles so v7x's 2 TCs both work
        tm = min(tm, _round_up((M + 1) // 2, 8))
    return tm


def _conv_tile(x_ref, w_ref, *, K, T_out, stride, dilation, fused):
    """Conv output for this M-tile as a 2-D f32 array of shape (tm*T_out, C_out)."""
    c_in = x_ref.shape[2]

    def tap2d(k):
        if stride == 1:
            t = x_ref[:, pl.ds(k * dilation, T_out), :]
        else:
            t = x_ref[:, pl.ds(k * dilation, T_out, stride=stride), :]
        return t.reshape(-1, c_in)

    if fused:   # C_in % 128 == 0: lane-aligned concat + one >=256 contraction
        slab = tap2d(0) if K == 1 else jnp.concatenate(
            [tap2d(k) for k in range(K)], axis=-1)
        return jnp.dot(slab, w_ref[...], preferred_element_type=jnp.float32)

    # K accumulating 2-D matmuls straight off each tap slice (no concat slab).
    acc = jnp.dot(tap2d(0), w_ref[0], preferred_element_type=jnp.float32)
    for k in range(1, K):
        acc = acc + jnp.dot(tap2d(k), w_ref[k], preferred_element_type=jnp.float32)
    return acc


def _stats_kernel(x_ref, w_ref, psum_ref, pq_ref, *, K, T_out, stride, dilation,
                  fused):
    acc = _conv_tile(x_ref, w_ref, K=K, T_out=T_out, stride=stride,
                     dilation=dilation, fused=fused)
    n_full = acc.shape[0]                         # tm*T_out (incl. zero-padded rows)
    c = acc.shape[1]
    s = jnp.sum(acc, axis=0, keepdims=True)       # (1, C) channel sums
    ctr = s * (1.0 / n_full)                      # per-tile shift -> no cancellation
    d = acc - ctr
    q = jnp.sum(d * d, axis=0, keepdims=True)     # (1, C) shifted sum of squares
    psum_ref[0] = jnp.broadcast_to(s, (8, c))
    pq_ref[0] = jnp.broadcast_to(q, (8, c))


def _apply_kernel(x_ref, w_ref, scale_ref, shift_ref, o_ref, *, K, T_out, stride,
                  dilation, fused):
    acc = _conv_tile(x_ref, w_ref, K=K, T_out=T_out, stride=stride,
                     dilation=dilation, fused=fused)
    o_ref[...] = (acc * scale_ref[...] + shift_ref[...]).astype(o_ref.dtype)


def temporal_conv(x, w, bias, gamma, beta, *, kernel_size, stride=1, dilation=1,
                  eps=1e-5):
    """x: (N, C_in, T, V) NCHW; w: (C_out, C_in, K, 1); returns (N, C_out, T_out, V)."""
    del bias   # exactly absorbed by the training-mode BN mean subtraction
    N, C_in, T, V = x.shape
    C_out = w.shape[0]
    K = kernel_size
    pad = (K + (K - 1) * (dilation - 1) - 1) // 2
    T_out = (T + 2 * pad - dilation * (K - 1) - 1) // stride + 1
    T_pad = T + 2 * pad
    M = N * V

    in_bytes = jnp.dtype(MATMUL_DTYPE).itemsize
    vmem_cap = _vmem_capacity_bytes()
    budget = max(8 * 1024 * 1024, int(vmem_cap * 0.33))
    vmem_limit = max(32 * 1024 * 1024, int(vmem_cap * 0.75))

    tm = _pick_tile_m(M, T_pad, T_out, C_in, C_out, in_bytes, budget)
    Mp = _round_up(M, tm)
    num_tiles = Mp // tm

    fused = (K > 1) and (C_in % 128 == 0)

    # ---- layout glue (one transpose + pad in, one transpose out) -----------
    xt = jnp.transpose(x, (0, 3, 2, 1)).reshape(M, T, C_in).astype(MATMUL_DTYPE)
    # Padded rows / time must stay exactly zero: the stats correction below
    # relies on padded rows producing a zero conv output.
    x_p = jnp.pad(xt, ((0, Mp - M), (pad, pad), (0, 0)))          # (Mp, T_pad, C_in)

    wt = jnp.transpose(w[:, :, :, 0], (2, 1, 0)).astype(MATMUL_DTYPE)  # (K, C_in, C_out)
    if fused:
        w_dev = wt.reshape(K * C_in, C_out)
        w_spec = pl.BlockSpec((K * C_in, C_out), lambda i: (0, 0))
    else:
        w_dev = wt
        w_spec = pl.BlockSpec((K, C_in, C_out), lambda i: (0, 0, 0))

    cparams = pltpu.CompilerParams(dimension_semantics=("parallel",),
                                   vmem_limit_bytes=vmem_limit)

    # ---- pass 1: per-tile conv (VMEM only) -> tiny per-tile BN statistics ---
    stats_kernel = functools.partial(_stats_kernel, K=K, T_out=T_out,
                                     stride=stride, dilation=dilation, fused=fused)
    psum, pq = pl.pallas_call(
        stats_kernel,
        out_shape=(jax.ShapeDtypeStruct((num_tiles, 8, C_out), jnp.float32),
                   jax.ShapeDtypeStruct((num_tiles, 8, C_out), jnp.float32)),
        grid=(num_tiles,),
        in_specs=[pl.BlockSpec((tm, T_pad, C_in), lambda i: (i, 0, 0)), w_spec],
        out_specs=(pl.BlockSpec((1, 8, C_out), lambda i: (i, 0, 0)),
                   pl.BlockSpec((1, 8, C_out), lambda i: (i, 0, 0))),
        compiler_params=cparams,
    )(x_p, w_dev)

    # ---- tiny per-channel BN math in plain JAX (exact Chan-style merge) -----
    s_tile = psum[:, 0, :]                              # (num_tiles, C_out)
    q_tile = pq[:, 0, :]
    n_full = float(tm * T_out)                          # per-tile count incl. padded rows
    rows_real = jnp.minimum(tm, M - jnp.arange(num_tiles) * tm).astype(jnp.float32)
    n_real = (rows_real * T_out)[:, None]               # (num_tiles, 1) real counts
    n_pad = n_full - n_real
    c_i = s_tile / n_full                               # per-tile shift used in-kernel
    q_real = q_tile - n_pad * (c_i * c_i)               # drop padded-zero contributions
    n_total = float(M * T_out)
    mean = jnp.sum(s_tile, axis=0) / n_total            # (C_out,)
    d = c_i - mean[None, :]
    ssd = q_real + 2.0 * d * (s_tile - n_real * c_i) + n_real * (d * d)
    var = jnp.maximum(jnp.sum(ssd, axis=0) / n_total, 0.0)
    inv = jax.lax.rsqrt(var + eps)
    scale = gamma.reshape(-1).astype(jnp.float32) * inv
    shift = beta.reshape(-1).astype(jnp.float32) - mean * scale

    # ---- pass 2: recompute conv per tile and fuse the BN affine -------------
    apply_kernel = functools.partial(_apply_kernel, K=K, T_out=T_out,
                                     stride=stride, dilation=dilation, fused=fused)
    out_cl = pl.pallas_call(
        apply_kernel,
        out_shape=jax.ShapeDtypeStruct((Mp * T_out, C_out), jnp.float32),
        grid=(num_tiles,),
        in_specs=[pl.BlockSpec((tm, T_pad, C_in), lambda i: (i, 0, 0)),
                  w_spec,
                  pl.BlockSpec((1, C_out), lambda i: (0, 0)),
                  pl.BlockSpec((1, C_out), lambda i: (0, 0))],
        out_specs=pl.BlockSpec((tm * T_out, C_out), lambda i: (i, 0)),
        compiler_params=cparams,
    )(x_p, w_dev, scale.reshape(1, C_out), shift.reshape(1, C_out))

    # Back to NCHW (drop padded rows).
    out = out_cl.reshape(Mp, T_out, C_out)[:M].reshape(N, V, T_out, C_out)
    return jnp.transpose(out, (0, 3, 2, 1))


def _reference_forward(x, w, bias, gamma, beta, *, kernel_size, stride=1,
                       dilation=1, eps=1e-5):
    """Pure-JAX reference matching the PyTorch forward (training-mode BN)."""
    K = kernel_size
    C_out = w.shape[0]
    pad = (K + (K - 1) * (dilation - 1) - 1) // 2
    y = jax.lax.conv_general_dilated(
        x, w,
        window_strides=(stride, 1),
        padding=((pad, pad), (0, 0)),
        rhs_dilation=(dilation, 1),
        dimension_numbers=("NCHW", "OIHW", "NCHW"))
    y = y + bias.reshape(1, C_out, 1, 1)
    mean = jnp.mean(y, axis=(0, 2, 3), keepdims=True)
    var = jnp.mean((y - mean) ** 2, axis=(0, 2, 3), keepdims=True)
    y = (y - mean) * jax.lax.rsqrt(var + eps)
    return y * gamma.reshape(1, C_out, 1, 1) + beta.reshape(1, C_out, 1, 1)


if __name__ == "__main__":
    key = jax.random.PRNGKey(0)
    N, C_in, C_out, T, V = 2, 4, 8, 16, 16
    K, stride, dilation = 3, 1, 1

    k_x, k_w, k_b, k_g, k_be = jax.random.split(key, 5)
    x = jax.random.normal(k_x, (N, C_in, T, V), jnp.float32)
    fan_in = C_in * K
    w = jax.random.normal(k_w, (C_out, C_in, K, 1), jnp.float32) / jnp.sqrt(fan_in)
    # Non-trivial bias / BN affine params to exercise the full forward path
    # (module defaults are bias=0, gamma=1, beta=0).
    bias = 0.1 * jax.random.normal(k_b, (C_out,), jnp.float32)
    gamma = 1.0 + 0.1 * jax.random.normal(k_g, (C_out,), jnp.float32)
    beta = 0.1 * jax.random.normal(k_be, (C_out,), jnp.float32)

    out = temporal_conv(x, w, bias, gamma, beta,
                        kernel_size=K, stride=stride, dilation=dilation)
    out = jax.block_until_ready(out)

    ref = _reference_forward(x, w, bias, gamma, beta,
                             kernel_size=K, stride=stride, dilation=dilation)
    ref = jax.block_until_ready(ref)

    if out.shape != ref.shape:
        raise AssertionError(f"shape mismatch: {out.shape} vs {ref.shape}")
    # bf16 MXU inputs (f32 accumulation) -> relaxed tolerance per the review.
    tol = 5e-2 if jnp.dtype(MATMUL_DTYPE) == jnp.dtype(jnp.bfloat16) else 1e-4
    if not bool(jnp.allclose(out, ref, rtol=tol, atol=tol)):
        err = float(jnp.max(jnp.abs(out - ref)))
        raise AssertionError(
            f"Pallas kernel output does not match reference (max abs err {err})")

    print("KERNEL_OK")
</pallas_src>

<mosaic_0001>
module attributes {stable_mosaic.version = 11 : i64} {
  func.func @_stats_kernel(%arg0: i32, %arg1: memref<16x18x4xbf16, #tpu.memory_space<vmem>>, %arg2: memref<3x4x8xbf16, #tpu.memory_space<vmem>>, %arg3: memref<1x8x8xf32, #tpu.memory_space<vmem>>, %arg4: memref<1x8x8xf32, #tpu.memory_space<vmem>>) attributes {dimension_semantics = [#tpu.dimension_semantics<parallel>], iteration_bounds = array<i64: 2>, scalar_prefetch = 0 : i64, scratch_operands = 0 : i64, tpu.core_type = #tpu.core_type<tc>, window_params = [{transform_indices = @transform_0, window_bounds = array<i64: 16, 18, 4>}, {pipeline_mode = #tpu.pipeline_mode<synchronous>, transform_indices = @transform_1, window_bounds = array<i64: 3, 4, 8>}, {transform_indices = @transform_2, window_bounds = array<i64: 1, 8, 8>}, {transform_indices = @transform_3, window_bounds = array<i64: 1, 8, 8>}]} {
    %c0 = arith.constant 0 : index
    %c0_0 = arith.constant 0 : index
    %c0_1 = arith.constant 0 : index
    %0 = vector.load %arg1[%c0, %c0_0, %c0_1] : memref<16x18x4xbf16, #tpu.memory_space<vmem>>, vector<16x16x4xbf16>
    %1 = vector.shape_cast %0 : vector<16x16x4xbf16> to vector<256x4xbf16>
    %c0_2 = arith.constant 0 : index
    %c0_3 = arith.constant 0 : index
    %c0_4 = arith.constant 0 : index
    %2 = vector.load %arg2[%c0_2, %c0_3, %c0_4] : memref<3x4x8xbf16, #tpu.memory_space<vmem>>, vector<1x4x8xbf16>
    %3 = vector.shape_cast %2 : vector<1x4x8xbf16> to vector<4x8xbf16>
    %cst = arith.constant dense<0.000000e+00> : vector<256x8xf32>
    %4 = tpu.matmul %1, %3, %cst {dimension_numbers = #tpu.dot_dimension_numbers<[1], [0], [0], [1], [0, 0, 1, 1], [], []>} : vector<256x4xbf16>, vector<4x8xbf16>, vector<256x8xf32> -> vector<256x8xf32>
    %c0_5 = arith.constant 0 : index
    %c1 = arith.constant 1 : index
    %c0_6 = arith.constant 0 : index
    %5 = vector.load %arg1[%c0_5, %c1, %c0_6] : memref<16x18x4xbf16, #tpu.memory_space<vmem>>, vector<16x16x4xbf16>
    %6 = vector.shape_cast %5 : vector<16x16x4xbf16> to vector<256x4xbf16>
    %c1_7 = arith.constant 1 : index
    %c0_8 = arith.constant 0 : index
    %c0_9 = arith.constant 0 : index
    %7 = vector.load %arg2[%c1_7, %c0_8, %c0_9] : memref<3x4x8xbf16, #tpu.memory_space<vmem>>, vector<1x4x8xbf16>
    %8 = vector.shape_cast %7 : vector<1x4x8xbf16> to vector<4x8xbf16>
    %cst_10 = arith.constant dense<0.000000e+00> : vector<256x8xf32>
    %9 = tpu.matmul %6, %8, %cst_10 {dimension_numbers = #tpu.dot_dimension_numbers<[1], [0], [0], [1], [0, 0, 1, 1], [], []>} : vector<256x4xbf16>, vector<4x8xbf16>, vector<256x8xf32> -> vector<256x8xf32>
    %10 = arith.addf %4, %9 : vector<256x8xf32>
    %c0_11 = arith.constant 0 : index
    %c2 = arith.constant 2 : index
    %c0_12 = arith.constant 0 : index
    %11 = vector.load %arg1[%c0_11, %c2, %c0_12] : memref<16x18x4xbf16, #tpu.memory_space<vmem>>, vector<16x16x4xbf16>
    %12 = vector.shape_cast %11 : vector<16x16x4xbf16> to vector<256x4xbf16>
    %c2_13 = arith.constant 2 : index
    %c0_14 = arith.constant 0 : index
    %c0_15 = arith.constant 0 : index
    %13 = vector.load %arg2[%c2_13, %c0_14, %c0_15] : memref<3x4x8xbf16, #tpu.memory_space<vmem>>, vector<1x4x8xbf16>
    %14 = vector.shape_cast %13 : vector<1x4x8xbf16> to vector<4x8xbf16>
    %cst_16 = arith.constant dense<0.000000e+00> : vector<256x8xf32>
    %15 = tpu.matmul %12, %14, %cst_16 {dimension_numbers = #tpu.dot_dimension_numbers<[1], [0], [0], [1], [0, 0, 1, 1], [], []>} : vector<256x4xbf16>, vector<4x8xbf16>, vector<256x8xf32> -> vector<256x8xf32>
    %16 = arith.addf %10, %15 : vector<256x8xf32>
    %cst_17 = arith.constant dense<0.000000e+00> : vector<8xf32>
    %17 = vector.multi_reduction <add>, %16, %cst_17 [0] : vector<256x8xf32> to vector<8xf32>
    %18 = vector.shape_cast %17 : vector<8xf32> to vector<1x8xf32>
    %cst_18 = arith.constant 3.906250e-03 : f32
    %19 = vector.broadcast %cst_18 : f32 to vector<1x8xf32>
    %20 = arith.mulf %18, %19 : vector<1x8xf32>
    %21 = vector.broadcast %20 : vector<1x8xf32> to vector<256x8xf32>
    %22 = arith.subf %16, %21 : vector<256x8xf32>
    %23 = arith.mulf %22, %22 : vector<256x8xf32>
    %cst_19 = arith.constant dense<0.000000e+00> : vector<8xf32>
    %24 = vector.multi_reduction <add>, %23, %cst_19 [0] : vector<256x8xf32> to vector<8xf32>
    %25 = vector.shape_cast %24 : vector<8xf32> to vector<1x8xf32>
    %26 = vector.shape_cast %18 : vector<1x8xf32> to vector<1x8xf32>
    %27 = vector.broadcast %26 : vector<1x8xf32> to vector<8x8xf32>
    %c0_20 = arith.constant 0 : index
    %c0_21 = arith.constant 0 : index
    %c0_22 = arith.constant 0 : index
    %28 = vector.load %arg3[%c0_20, %c0_21, %c0_22] : memref<1x8x8xf32, #tpu.memory_space<vmem>>, vector<1x8x8xf32>
    %29 = vector.shape_cast %28 : vector<1x8x8xf32> to vector<8x8xf32>
    %30 = vector.shape_cast %27 : vector<8x8xf32> to vector<1x8x8xf32>
    tpu.vector_store %arg3[%c0_20, %c0_21, %c0_22], %30 {strides = array<i32>} : memref<1x8x8xf32, #tpu.memory_space<vmem>>, vector<1x8x8xf32>,
    %31 = vector.shape_cast %25 : vector<1x8xf32> to vector<1x8xf32>
    %32 = vector.broadcast %31 : vector<1x8xf32> to vector<8x8xf32>
    %c0_23 = arith.constant 0 : index
    %c0_24 = arith.constant 0 : index
    %c0_25 = arith.constant 0 : index
    %33 = vector.load %arg4[%c0_23, %c0_24, %c0_25] : memref<1x8x8xf32, #tpu.memory_space<vmem>>, vector<1x8x8xf32>
    %34 = vector.shape_cast %33 : vector<1x8x8xf32> to vector<8x8xf32>
    %35 = vector.shape_cast %32 : vector<8x8xf32> to vector<1x8x8xf32>
    tpu.vector_store %arg4[%c0_23, %c0_24, %c0_25], %35 {strides = array<i32>} : memref<1x8x8xf32, #tpu.memory_space<vmem>>, vector<1x8x8xf32>,
    return
  }
  func.func @transform_0(%arg0: i32) -> (i32, i32, i32) {
    %c0_i32 = arith.constant 0 : i32
    %c0_i32_0 = arith.constant 0 : i32
    %c0_i32_1 = arith.constant 0 : i32
    return %arg0, %c0_i32, %c0_i32_0 : i32, i32, i32
  }
  func.func @transform_1(%arg0: i32) -> (i32, i32, i32) {
    %c0_i32 = arith.constant 0 : i32
    %c0_i32_0 = arith.constant 0 : i32
    %c0_i32_1 = arith.constant 0 : i32
    %c0_i32_2 = arith.constant 0 : i32
    return %c0_i32, %c0_i32_0, %c0_i32_1 : i32, i32, i32
  }
  func.func @transform_2(%arg0: i32) -> (i32, i32, i32) {
    %c0_i32 = arith.constant 0 : i32
    %c0_i32_0 = arith.constant 0 : i32
    %c0_i32_1 = arith.constant 0 : i32
    return %arg0, %c0_i32, %c0_i32_0 : i32, i32, i32
  }
  func.func @transform_3(%arg0: i32) -> (i32, i32, i32) {
    %c0_i32 = arith.constant 0 : i32
    %c0_i32_0 = arith.constant 0 : i32
    %c0_i32_1 = arith.constant 0 : i32
    return %arg0, %c0_i32, %c0_i32_0 : i32, i32, i32
  }
}

</mosaic_0001>

<llo_original>
// kernel: tpu_custom_call.1
$region0: #{tpu_custom_call.1}
  #allocation0 [shape = 'u32[]', space=smem, size = 0x4, offset = 0x4, fixed_abs, tag = 'smem constant byte address 0x4 - core index']
  #allocation1 [shape = 'u32[144,128]{1,0:T(1,128)}', space=vmem, size = 0x12000, scoped, tag = 'internal scratch']
  %s0 = inlined_call_operand.vmem [shape: bf16[32,18,4], index: 0, kind: input, shape index: {}]
  %s1 = inlined_call_operand.vmem [shape: bf16[3,4,8], index: 1, kind: input, shape index: {}]
  %s2 = inlined_call_operand.hbm [shape: f32[2,8,8], index: 2, kind: output, shape index: {0}]
  %s3 = inlined_call_operand.hbm [shape: f32[2,8,8], index: 3, kind: output, shape index: {1}]
  %4 = xla_tuple %s2, %s3
  %s5 = sld [smem:[#allocation0]]
  $region49: #{tpu_custom_call.1} parent=0
    _
  %s7 = ssub.s32 1, %s5
  %s8 = scalar_select 0, %s7, %s5
  $region1: #{tpu_custom_call.1} parent=0
    #allocation2 [shape = 'u8[8192]{0}', space=vmem, size = 0x2000, scoped, tag = 'output window, operand 0']
    #allocation3 [shape = 's32[2]{0}', space=sflag, size = 0x8, scoped, tag = 'scoped memory for tpu_custom_call.1']
    #allocation4 [shape = 'u8[8192]{0}', space=vmem, size = 0x2000, scoped, tag = 'output window, operand 1']
    #allocation5 [shape = 's32[2]{0}', space=sflag, size = 0x8, scoped, tag = 'scoped memory for tpu_custom_call.1']
    %9 = vsyncpa [#allocation3], 0
    %s10 = scalar_lea.sflag [#allocation3], 1
    %11 = vsyncpa %s10, 0
    %12 = vsyncpa [#allocation5], 0
    %s13 = scalar_lea.sflag [#allocation5], 1
    %14 = vsyncpa %s13, 0
    loop: start=0, step=1, limit=4
    $region2: #{tpu_custom_call.1} parent=1 // loop_pre_header
      _
    $region3: #{tpu_custom_call.1} parent=1 // loop_header
      %s16 = sphi 0, %s20
      %p17 = scmp.ge.s32.totalorder %s16, 4
      %s26 = sphi 0, %s28
      %s29 = sphi 0, %s26
      %s30 = sphi 0, %s29
      %s46 = sphi 0, %s30
      %s50 = sphi 0, %s50
      %s52 = sphi 0, %s50
      %s53 = sphi 0, %s52
      %s67 = sphi 0, %s53
      %s73 = sphi 0, %s75
      %s76 = sphi 0, %s73
      %s77 = sphi 0, %s76
      %s93 = sphi 0, %s77
      %s99 = sphi 0, %s101
      %s102 = sphi 0, %s99
      %s103 = sphi 0, %s102
      %s119 = sphi 0, %s103
    $region4: #{tpu_custom_call.1} parent=1 // loop_header_branch
      %19 = sbr.rel (%p17) target = $region8
    $region5: #{tpu_custom_call.1} parent=1 // loop_body
      %s21 = ssub.s32 %s16, 1
      %s22 = ssub.s32 %s16, 2
      %s23 = sadd.s32 %s16, 1
      %s24 = ssub.s32 %s16, %s23
      %p25 = scmp.eq.s32.totalorder %s24, 0
      %s27 = sadd.s32 %s26, 1
      %s28 = scalar_select %p25, %s26, %s27
      %p31 = pneg %p25
      %p32 = scmp.eq.s32.totalorder %s16, 1
      %p33 = por %p31, %p32
      %p34 = scmp.ne.s32.totalorder %s26, %s29
      %p35 = scmp.eq.s32.totalorder %s16, 0
      %p36 = por %p34, %p35
      %p37 = scmp.ne.s32.totalorder %s26, %s29
      %p38 = scmp.eq.s32.totalorder %s21, 1
      %p39 = por %p37, %p38
      %p40 = scmp.ne.s32.totalorder %s29, %s30
      %p41 = scmp.eq.s32.totalorder %s21, 0
      %p42 = por %p40, %p41
      %p43 = scmp.ne.s32.totalorder %s29, %s30
      %p44 = scmp.eq.s32.totalorder %s22, 1
      %p45 = por %p43, %p44
      %p47 = scmp.ne.s32.totalorder %s30, %s46
      %p48 = scmp.eq.s32.totalorder %s22, 0
      %p49 = por %p47, %p48
      %s51 = sadd.s32 %s50, 1
      %p54 = scmp.eq.s32.totalorder %s16, 1
      %p55 = scmp.ne.s32.totalorder %s50, %s52
      %p56 = scmp.eq.s32.totalorder %s16, 0
      %p57 = por %p55, %p56
      %p58 = scmp.ne.s32.totalorder %s50, %s52
      %p59 = scmp.eq.s32.totalorder %s21, 1
      %p60 = por %p58, %p59
      %p61 = scmp.ne.s32.totalorder %s52, %s53
      %p62 = scmp.eq.s32.totalorder %s21, 0
      %p63 = por %p61, %p62
      %p64 = scmp.ne.s32.totalorder %s52, %s53
      %p65 = scmp.eq.s32.totalorder %s22, 1
      %p66 = por %p64, %p65
      %p68 = scmp.ne.s32.totalorder %s53, %s67
      %p69 = scmp.eq.s32.totalorder %s22, 0
      %p70 = por %p68, %p69
      %s71 = ssub.s32 %s16, %s23
      %p72 = scmp.eq.s32.totalorder %s71, 0
      %s74 = sadd.s32 %s73, 1
      %s75 = scalar_select %p72, %s73, %s74
      %p78 = pneg %p72
      %p79 = scmp.eq.s32.totalorder %s16, 1
      %p80 = por %p78, %p79
      %p81 = scmp.ne.s32.totalorder %s73, %s76
      %p82 = scmp.eq.s32.totalorder %s16, 0
      %p83 = por %p81, %p82
      %p84 = scmp.ne.s32.totalorder %s73, %s76
      %p85 = scmp.eq.s32.totalorder %s21, 1
      %p86 = por %p84, %p85
      %p87 = scmp.ne.s32.totalorder %s76, %s77
      %p88 = scmp.eq.s32.totalorder %s21, 0
      %p89 = por %p87, %p88
      %p90 = scmp.ne.s32.totalorder %s76, %s77
      %p91 = scmp.eq.s32.totalorder %s22, 1
      %p92 = por %p90, %p91
      %p94 = scmp.ne.s32.totalorder %s77, %s93
      %p95 = scmp.eq.s32.totalorder %s22, 0
      %p96 = por %p94, %p95
      %s97 = ssub.s32 %s16, %s23
      %p98 = scmp.eq.s32.totalorder %s97, 0
      %s100 = sadd.s32 %s99, 1
      %s101 = scalar_select %p98, %s99, %s100
      %p104 = pneg %p98
      %p105 = scmp.eq.s32.totalorder %s16, 1
      %p106 = por %p104, %p105
      %p107 = scmp.ne.s32.totalorder %s99, %s102
      %p108 = scmp.eq.s32.totalorder %s16, 0
      %p109 = por %p107, %p108
      %p110 = scmp.ne.s32.totalorder %s99, %s102
      %p111 = scmp.eq.s32.totalorder %s21, 1
      %p112 = por %p110, %p111
      %p113 = scmp.ne.s32.totalorder %s102, %s103
      %p114 = scmp.eq.s32.totalorder %s21, 0
      %p115 = por %p113, %p114
      %p116 = scmp.ne.s32.totalorder %s102, %s103
      %p117 = scmp.eq.s32.totalorder %s22, 1
      %p118 = por %p116, %p117
      %p120 = scmp.ne.s32.totalorder %s103, %s119
      %p121 = scmp.eq.s32.totalorder %s22, 0
      %p122 = por %p120, %p121
      %p123 = scmp.le.s32.totalorder 1, %s16
      %p124 = scmp.lt.s32.totalorder %s16, 3
      %p125 = pnand %p123, %p124
      %p126 = pneg %p125
      // Predicated region
      $region9: #{tpu_custom_call.1} parent=5 // pred_check
        _
      $region10: #{tpu_custom_call.1} parent=5 // pred_check_branch
        %128 = sbr.rel (%p125) target = $region12
      $region11: #{tpu_custom_call.1} parent=5 // pred_region
        %s129 = ssub.s32 %s16, 1
        // Predicated region
        $region13: #{tpu_custom_call.1} parent=11 // pred_check
          %p130 = pneg %p63
        $region14: #{tpu_custom_call.1} parent=11 // pred_check_branch
          %132 = sbr.rel (%p130) target = $region16
        $region15: #{tpu_custom_call.1} parent=11 // pred_region
          _
        $region16: #{tpu_custom_call.1} parent=11 // pred_fallthru
          _
      $region12: #{tpu_custom_call.1} parent=5 // pred_fallthru
        _
      %p133 = scmp.lt.s32.totalorder %s16, 2
      // Predicated region
      $region17: #{tpu_custom_call.1} parent=5 // pred_check
        %p134 = pneg %p133
      $region18: #{tpu_custom_call.1} parent=5 // pred_check_branch
        %136 = sbr.rel (%p134) target = $region20
      $region19: #{tpu_custom_call.1} parent=5 // pred_region
        // Predicated region
        $region21: #{tpu_custom_call.1} parent=19 // pred_check
          %p137 = pneg %p36
        $region22: #{tpu_custom_call.1} parent=19 // pred_check_branch
          %139 = sbr.rel (%p137) target = $region24
        $region23: #{tpu_custom_call.1} parent=19 // pred_region
          %s140 = smul.u32 16, %s16
          %p141 = scmp.lt.s32.totalorder %s140, 31
          %s142 = scalar_select %p141, %s140, 31
          %s143 = smul.addr %s142, 3
          %s144 = smul.addr %s143, 4
          %s145 = scalar_lea.vmem %s0, %s144
          %s146 = smul.u32 16, %s16
        $region24: #{tpu_custom_call.1} parent=19 // pred_fallthru
          _
      $region20: #{tpu_custom_call.1} parent=5 // pred_fallthru
        _
      %p147 = scmp.le.s32.totalorder 1, %s16
      %p148 = scmp.lt.s32.totalorder %s16, 3
      %p149 = pnand %p147, %p148
      %p150 = pneg %p149
      // Predicated region
      $region25: #{tpu_custom_call.1} parent=5 // pred_check
        _
      $region26: #{tpu_custom_call.1} parent=5 // pred_check_branch
        %152 = sbr.rel (%p149) target = $region28
      $region27: #{tpu_custom_call.1} parent=5 // pred_region
        %s153 = ssub.s32 %s16, 1
        %s154 = smul.u32 16, %s21
        %p155 = scmp.lt.s32.totalorder %s154, 31
        %s156 = scalar_select %p155, %s154, 31
        %s157 = smul.addr %s156, 3
        %s158 = smul.addr %s157, 4
        %s159 = scalar_lea.vmem %s0, %s158
        %p160 = pneg %p42
        %p161 = pneg %p39
        %p162 = pneg %p63
        %p163 = pneg %p60
        %p164 = pneg %p89
        %p165 = pneg %p86
        %s166 = sand.u32 %s76, 1
        %s167 = scalar_lea.sflag [#allocation3], %s166
        %s168 = sand.u32 %s76, 1
        %s169 = smul.addr %s168, 8
        %s170 = scalar_lea.vmem [#allocation2], %s169
        %p171 = pneg %p115
        %p172 = pneg %p112
        %s173 = sand.u32 %s102, 1
        %s174 = scalar_lea.sflag [#allocation5], %s173
        %s175 = sand.u32 %s102, 1
        %s176 = smul.addr %s175, 8
        %s177 = scalar_lea.vmem [#allocation4], %s176
        %s178 = smul.u32 16, %s21
        %p179 = scmp.lt.s32.totalorder %s178, 31
        %s180 = scalar_select %p179, %s178, 31
        %s181 = smul.addr %s180, 3
        %s182 = smul.addr %s181, 4
        %s183 = scalar_lea.vmem %s0, %s182
        %s184 = smul.u32 16, %s21
        %v186 = vld [vmem:[%s183] sm:$0xf]
        %v187 = vld [vmem:[%s183 + $0x4] sm:$0xf]
        %v188 = vld [vmem:[%s183 + $0xc] sm:$0xf]
        %v189 = vld [vmem:[%s183 + $0x10] sm:$0xf]
        %v190 = vld [vmem:[%s183 + $0x18] sm:$0xf]
        %v191 = vld [vmem:[%s183 + $0x1c] sm:$0xf]
        %v192 = vld [vmem:[%s183 + $0x24] sm:$0xf]
        %v193 = vld [vmem:[%s183 + $0x28] sm:$0xf]
        %v194 = vld [vmem:[%s183 + $0x30] sm:$0xf]
        %v195 = vld [vmem:[%s183 + $0x34] sm:$0xf]
        %v196 = vld [vmem:[%s183 + $0x3c] sm:$0xf]
        %v197 = vld [vmem:[%s183 + $0x40] sm:$0xf]
        %v198 = vld [vmem:[%s183 + $0x48] sm:$0xf]
        %v199 = vld [vmem:[%s183 + $0x4c] sm:$0xf]
        %v200 = vld [vmem:[%s183 + $0x54] sm:$0xf]
        %v201 = vld [vmem:[%s183 + $0x58] sm:$0xf]
        %v202 = vld [vmem:[%s183 + $0x60] sm:$0xf]
        %v203 = vld [vmem:[%s183 + $0x64] sm:$0xf]
        %v204 = vld [vmem:[%s183 + $0x6c] sm:$0xf]
        %v205 = vld [vmem:[%s183 + $0x70] sm:$0xf]
        %v206 = vld [vmem:[%s183 + $0x78] sm:$0xf]
        %v207 = vld [vmem:[%s183 + $0x7c] sm:$0xf]
        %v208 = vld [vmem:[%s183 + $0x84] sm:$0xf]
        %v209 = vld [vmem:[%s183 + $0x88] sm:$0xf]
        %v210 = vld [vmem:[%s183 + $0x90] sm:$0xf]
        %v211 = vld [vmem:[%s183 + $0x94] sm:$0xf]
        %v212 = vld [vmem:[%s183 + $0x9c] sm:$0xf]
        %v213 = vld [vmem:[%s183 + $0xa0] sm:$0xf]
        %v214 = vld [vmem:[%s183 + $0xa8] sm:$0xf]
        %v215 = vld [vmem:[%s183 + $0xac] sm:$0xf]
        %v216 = vld [vmem:[%s183 + $0xb4] sm:$0xf]
        %v217 = vld [vmem:[%s183 + $0xb8] sm:$0xf]
        %v218 = vld [vmem:[%s1] sm:$0x3]
        %v219 = vld [vmem:[%s183 + $0x8] sm:$0x1]
        %v220 = vld [vmem:[%s183 + $0x14] sm:$0x1]
        %v221 = vld [vmem:[%s183 + $0x20] sm:$0x1]
        %v222 = vld [vmem:[%s183 + $0x2c] sm:$0x1]
        %v223 = vld [vmem:[%s183 + $0x38] sm:$0x1]
        %v224 = vld [vmem:[%s183 + $0x44] sm:$0x1]
        %v225 = vld [vmem:[%s183 + $0x50] sm:$0x1]
        %v226 = vld [vmem:[%s183 + $0x5c] sm:$0x1]
        %v227 = vld [vmem:[%s183 + $0x68] sm:$0x1]
        %v228 = vld [vmem:[%s183 + $0x74] sm:$0x1]
        %v229 = vld [vmem:[%s183 + $0x80] sm:$0x1]
        %v230 = vld [vmem:[%s183 + $0x8c] sm:$0x1]
        %v231 = vld [vmem:[%s183 + $0x98] sm:$0x1]
        %v232 = vld [vmem:[%s183 + $0xa4] sm:$0x1]
        %v233 = vld [vmem:[%s183 + $0xb0] sm:$0x1]
        %v234 = vld [vmem:[%s183 + $0xbc] sm:$0x1]
        %vm235 = vsmask.f32 3328
        %vm236 = vsmask.f32 7440
        %vm237 = vmor %vm235, %vm236
        %v239 = vshrl.u32 %v186, 16
        %v241 = vrot.slane %v239, 4
        %v242 = vshll.u32 %v186, 16
        %v244 = vrot.slane %v242, 5
        %v245 = vor.u32 %v241, %v244
        %v246 = vrot.slane %v245, 4
        %v248 = vshll.u32 %v187, 16
        %v250 = vrot.slane %v248, 5
        %v251 = vsel %vm237, %v246, %v250
        %v252 = vshrl.u32 %v187, 16
        %v254 = vrot.slane %v252, 4
        %v255 = vor.u32 %v254, %v250
        %v256 = vrot.slane %v255, 4
        %v258 = vshll.u32 %v219, 16
        %v260 = vrot.slane %v258, 5
        %v261 = vsel %vm237, %v256, %v260
        %v263 = vshrl.u32 %v188, 16
        %v265 = vrot.slane %v263, 4
        %v266 = vshll.u32 %v188, 16
        %v268 = vrot.slane %v266, 5
        %v269 = vor.u32 %v265, %v268
        %v270 = vrot.slane %v269, 4
        %v272 = vshll.u32 %v189, 16
        %v274 = vrot.slane %v272, 5
        %v275 = vsel %vm237, %v270, %v274
        %v276 = vshrl.u32 %v189, 16
        %v278 = vrot.slane %v276, 4
        %v279 = vor.u32 %v278, %v274
        %v280 = vrot.slane %v279, 4
        %v282 = vshll.u32 %v220, 16
        %v284 = vrot.slane %v282, 5
        %v285 = vsel %vm237, %v280, %v284
        %v287 = vshrl.u32 %v190, 16
        %v289 = vrot.slane %v287, 4
        %v290 = vshll.u32 %v190, 16
        %v292 = vrot.slane %v290, 5
        %v293 = vor.u32 %v289, %v292
        %v294 = vrot.slane %v293, 4
        %v296 = vshll.u32 %v191, 16
        %v298 = vrot.slane %v296, 5
        %v299 = vsel %vm237, %v294, %v298
        %v300 = vshrl.u32 %v191, 16
        %v302 = vrot.slane %v300, 4
        %v303 = vor.u32 %v302, %v298
        %v304 = vrot.slane %v303, 4
        %v306 = vshll.u32 %v221, 16
        %v308 = vrot.slane %v306, 5
        %v309 = vsel %vm237, %v304, %v308
        %v311 = vshrl.u32 %v192, 16
        %v313 = vrot.slane %v311, 4
        %v314 = vshll.u32 %v192, 16
        %v316 = vrot.slane %v314, 5
        %v317 = vor.u32 %v313, %v316
        %v318 = vrot.slane %v317, 4
        %v320 = vshll.u32 %v193, 16
        %v322 = vrot.slane %v320, 5
        %v323 = vsel %vm237, %v318, %v322
        %v324 = vshrl.u32 %v193, 16
        %v326 = vrot.slane %v324, 4
        %v327 = vor.u32 %v326, %v322
        %v328 = vrot.slane %v327, 4
        %v330 = vshll.u32 %v222, 16
        %v332 = vrot.slane %v330, 5
        %v333 = vsel %vm237, %v328, %v332
        %v335 = vshrl.u32 %v194, 16
        %v337 = vrot.slane %v335, 4
        %v338 = vshll.u32 %v194, 16
        %v340 = vrot.slane %v338, 5
        %v341 = vor.u32 %v337, %v340
        %v342 = vrot.slane %v341, 4
        %v344 = vshll.u32 %v195, 16
        %v346 = vrot.slane %v344, 5
        %v347 = vsel %vm237, %v342, %v346
        %v348 = vshrl.u32 %v195, 16
        %v350 = vrot.slane %v348, 4
        %v351 = vor.u32 %v350, %v346
        %v352 = vrot.slane %v351, 4
        %v354 = vshll.u32 %v223, 16
        %v356 = vrot.slane %v354, 5
        %v357 = vsel %vm237, %v352, %v356
        %v359 = vshrl.u32 %v196, 16
        %v361 = vrot.slane %v359, 4
        %v362 = vshll.u32 %v196, 16
        %v364 = vrot.slane %v362, 5
        %v365 = vor.u32 %v361, %v364
        %v366 = vrot.slane %v365, 4
        %v368 = vshll.u32 %v197, 16
        %v370 = vrot.slane %v368, 5
        %v371 = vsel %vm237, %v366, %v370
        %v372 = vshrl.u32 %v197, 16
        %v374 = vrot.slane %v372, 4
        %v375 = vor.u32 %v374, %v370
        %v376 = vrot.slane %v375, 4
        %v378 = vshll.u32 %v224, 16
        %v380 = vrot.slane %v378, 5
        %v381 = vsel %vm237, %v376, %v380
        %v383 = vshrl.u32 %v198, 16
        %v385 = vrot.slane %v383, 4
        %v386 = vshll.u32 %v198, 16
        %v388 = vrot.slane %v386, 5
        %v389 = vor.u32 %v385, %v388
        %v390 = vrot.slane %v389, 4
        %v392 = vshll.u32 %v199, 16
        %v394 = vrot.slane %v392, 5
        %v395 = vsel %vm237, %v390, %v394
        %v396 = vshrl.u32 %v199, 16
        %v398 = vrot.slane %v396, 4
        %v399 = vor.u32 %v398, %v394
        %v400 = vrot.slane %v399, 4
        %v402 = vshll.u32 %v225, 16
        %v404 = vrot.slane %v402, 5
        %v405 = vsel %vm237, %v400, %v404
        %v407 = vshrl.u32 %v200, 16
        %v409 = vrot.slane %v407, 4
        %v410 = vshll.u32 %v200, 16
        %v412 = vrot.slane %v410, 5
        %v413 = vor.u32 %v409, %v412
        %v414 = vrot.slane %v413, 4
        %v416 = vshll.u32 %v201, 16
        %v418 = vrot.slane %v416, 5
        %v419 = vsel %vm237, %v414, %v418
        %v420 = vshrl.u32 %v201, 16
        %v422 = vrot.slane %v420, 4
        %v423 = vor.u32 %v422, %v418
        %v424 = vrot.slane %v423, 4
        %v426 = vshll.u32 %v226, 16
        %v428 = vrot.slane %v426, 5
        %v429 = vsel %vm237, %v424, %v428
        %v431 = vshrl.u32 %v202, 16
        %v433 = vrot.slane %v431, 4
        %v434 = vshll.u32 %v202, 16
        %v436 = vrot.slane %v434, 5
        %v437 = vor.u32 %v433, %v436
        %v438 = vrot.slane %v437, 4
        %v440 = vshll.u32 %v203, 16
        %v442 = vrot.slane %v440, 5
        %v443 = vsel %vm237, %v438, %v442
        %v444 = vshrl.u32 %v203, 16
        %v446 = vrot.slane %v444, 4
        %v447 = vor.u32 %v446, %v442
        %v448 = vrot.slane %v447, 4
        %v450 = vshll.u32 %v227, 16
        %v452 = vrot.slane %v450, 5
        %v453 = vsel %vm237, %v448, %v452
        %v455 = vshrl.u32 %v204, 16
        %v457 = vrot.slane %v455, 4
        %v458 = vshll.u32 %v204, 16
        %v460 = vrot.slane %v458, 5
        %v461 = vor.u32 %v457, %v460
        %v462 = vrot.slane %v461, 4
        %v464 = vshll.u32 %v205, 16
        %v466 = vrot.slane %v464, 5
        %v467 = vsel %vm237, %v462, %v466
        %v468 = vshrl.u32 %v205, 16
        %v470 = vrot.slane %v468, 4
        %v471 = vor.u32 %v470, %v466
        %v472 = vrot.slane %v471, 4
        %v474 = vshll.u32 %v228, 16
        %v476 = vrot.slane %v474, 5
        %v477 = vsel %vm237, %v472, %v476
        %v479 = vshrl.u32 %v206, 16
        %v481 = vrot.slane %v479, 4
        %v482 = vshll.u32 %v206, 16
        %v484 = vrot.slane %v482, 5
        %v485 = vor.u32 %v481, %v484
        %v486 = vrot.slane %v485, 4
        %v488 = vshll.u32 %v207, 16
        %v490 = vrot.slane %v488, 5
        %v491 = vsel %vm237, %v486, %v490
        %v492 = vshrl.u32 %v207, 16
        %v494 = vrot.slane %v492, 4
        %v495 = vor.u32 %v494, %v490
        %v496 = vrot.slane %v495, 4
        %v498 = vshll.u32 %v229, 16
        %v500 = vrot.slane %v498, 5
        %v501 = vsel %vm237, %v496, %v500
        %v503 = vshrl.u32 %v208, 16
        %v505 = vrot.slane %v503, 4
        %v506 = vshll.u32 %v208, 16
        %v508 = vrot.slane %v506, 5
        %v509 = vor.u32 %v505, %v508
        %v510 = vrot.slane %v509, 4
        %v512 = vshll.u32 %v209, 16
        %v514 = vrot.slane %v512, 5
        %v515 = vsel %vm237, %v510, %v514
        %v516 = vshrl.u32 %v209, 16
        %v518 = vrot.slane %v516, 4
        %v519 = vor.u32 %v518, %v514
        %v520 = vrot.slane %v519, 4
        %v522 = vshll.u32 %v230, 16
        %v524 = vrot.slane %v522, 5
        %v525 = vsel %vm237, %v520, %v524
        %v527 = vshrl.u32 %v210, 16
        %v529 = vrot.slane %v527, 4
        %v530 = vshll.u32 %v210, 16
        %v532 = vrot.slane %v530, 5
        %v533 = vor.u32 %v529, %v532
        %v534 = vrot.slane %v533, 4
        %v536 = vshll.u32 %v211, 16
        %v538 = vrot.slane %v536, 5
        %v539 = vsel %vm237, %v534, %v538
        %v540 = vshrl.u32 %v211, 16
        %v542 = vrot.slane %v540, 4
        %v543 = vor.u32 %v542, %v538
        %v544 = vrot.slane %v543, 4
        %v546 = vshll.u32 %v231, 16
        %v548 = vrot.slane %v546, 5
        %v549 = vsel %vm237, %v544, %v548
        %v551 = vshrl.u32 %v212, 16
        %v553 = vrot.slane %v551, 4
        %v554 = vshll.u32 %v212, 16
        %v556 = vrot.slane %v554, 5
        %v557 = vor.u32 %v553, %v556
        %v558 = vrot.slane %v557, 4
        %v560 = vshll.u32 %v213, 16
        %v562 = vrot.slane %v560, 5
        %v563 = vsel %vm237, %v558, %v562
        %v564 = vshrl.u32 %v213, 16
        %v566 = vrot.slane %v564, 4
        %v567 = vor.u32 %v566, %v562
        %v568 = vrot.slane %v567, 4
        %v570 = vshll.u32 %v232, 16
        %v572 = vrot.slane %v570, 5
        %v573 = vsel %vm237, %v568, %v572
        %v575 = vshrl.u32 %v214, 16
        %v577 = vrot.slane %v575, 4
        %v578 = vshll.u32 %v214, 16
        %v580 = vrot.slane %v578, 5
        %v581 = vor.u32 %v577, %v580
        %v582 = vrot.slane %v581, 4
        %v584 = vshll.u32 %v215, 16
        %v586 = vrot.slane %v584, 5
        %v587 = vsel %vm237, %v582, %v586
        %v588 = vshrl.u32 %v215, 16
        %v590 = vrot.slane %v588, 4
        %v591 = vor.u32 %v590, %v586
        %v592 = vrot.slane %v591, 4
        %v594 = vshll.u32 %v233, 16
        %v596 = vrot.slane %v594, 5
        %v597 = vsel %vm237, %v592, %v596
        %v599 = vshrl.u32 %v216, 16
        %v601 = vrot.slane %v599, 4
        %v602 = vshll.u32 %v216, 16
        %v604 = vrot.slane %v602, 5
        %v605 = vor.u32 %v601, %v604
        %v606 = vrot.slane %v605, 4
        %v608 = vshll.u32 %v217, 16
        %v610 = vrot.slane %v608, 5
        %v611 = vsel %vm237, %v606, %v610
        %v612 = vshrl.u32 %v217, 16
        %v614 = vrot.slane %v612, 4
        %v615 = vor.u32 %v614, %v610
        %v616 = vrot.slane %v615, 4
        %v618 = vshll.u32 %v234, 16
        %v620 = vrot.slane %v618, 5
        %v621 = vsel %vm237, %v616, %v620
        %s622 = scalar_lea.vmem %s1, 2
        %v623 = vld [vmem:[%s622] sm:$0x3]
        %v624 = vunpack.c.l.b16 %v251
        %v625 = vunpack.c.l.b16 %v261
        %v626 = vunpack.c.l.b16 %v275
        %v627 = vunpack.c.l.b16 %v285
        %v628 = vunpack.c.l.b16 %v299
        %v629 = vunpack.c.l.b16 %v309
        %v630 = vunpack.c.l.b16 %v323
        %v631 = vunpack.c.l.b16 %v333
        %v632 = vunpack.c.l.b16 %v347
        %v633 = vunpack.c.l.b16 %v357
        %v634 = vunpack.c.l.b16 %v371
        %v635 = vunpack.c.l.b16 %v381
        %v636 = vunpack.c.l.b16 %v395
        %v637 = vunpack.c.l.b16 %v405
        %v638 = vunpack.c.l.b16 %v419
        %v639 = vunpack.c.l.b16 %v429
        %v640 = vunpack.c.l.b16 %v443
        %v641 = vunpack.c.l.b16 %v453
        %v642 = vunpack.c.l.b16 %v467
        %v643 = vunpack.c.l.b16 %v477
        %v644 = vunpack.c.l.b16 %v491
        %v645 = vunpack.c.l.b16 %v501
        %v646 = vunpack.c.l.b16 %v515
        %v647 = vunpack.c.l.b16 %v525
        %v648 = vunpack.c.l.b16 %v539
        %v649 = vunpack.c.l.b16 %v549
        %v650 = vunpack.c.l.b16 %v563
        %v651 = vunpack.c.l.b16 %v573
        %v652 = vunpack.c.l.b16 %v587
        %v653 = vunpack.c.l.b16 %v597
        %v654 = vunpack.c.l.b16 %v611
        %v655 = vunpack.c.l.b16 %v621
        %v656 = vpack.c.b16 %v625, %v624
        %v657 = vpack.c.b16 %v627, %v626
        %v658 = vpack.c.b16 %v629, %v628
        %v659 = vpack.c.b16 %v631, %v630
        %v660 = vpack.c.b16 %v633, %v632
        %v661 = vpack.c.b16 %v635, %v634
        %v662 = vpack.c.b16 %v637, %v636
        %v663 = vpack.c.b16 %v639, %v638
        %v664 = vpack.c.b16 %v641, %v640
        %v665 = vpack.c.b16 %v643, %v642
        %v666 = vpack.c.b16 %v645, %v644
        %v667 = vpack.c.b16 %v647, %v646
        %v668 = vpack.c.b16 %v649, %v648
        %v669 = vpack.c.b16 %v651, %v650
        %v670 = vpack.c.b16 %v653, %v652
        %v671 = vpack.c.b16 %v655, %v654
        %vm672 = vcmask 31744
        %v674 = vsel %vm672, %v656, 0
        %v677 = vsel %vm672, %v657, 0
        %v680 = vsel %vm672, %v658, 0
        %v683 = vsel %vm672, %v659, 0
        %v686 = vsel %vm672, %v660, 0
        %v689 = vsel %vm672, %v661, 0
        %v692 = vsel %vm672, %v662, 0
        %v695 = vsel %vm672, %v663, 0
        %v698 = vsel %vm672, %v664, 0
        %v701 = vsel %vm672, %v665, 0
        %v704 = vsel %vm672, %v666, 0
        %v707 = vsel %vm672, %v667, 0
        %v710 = vsel %vm672, %v668, 0
        %v713 = vsel %vm672, %v669, 0
        %v716 = vsel %vm672, %v670, 0
        %v719 = vsel %vm672, %v671, 0
        %vm721 = vcmask 1041408
        %v723 = vsel %vm721, %v623, 0
        %725 = vmatprep.subr.bf16.mxu0 0
        %726 = vmatpush1.bf16.msra.mxu0 %v723
        %727 = vmatprep.subr.bf16.mxu0 0
        %728 = vmatpush1.bf16.msra.mxu0 0
        %729 = vmatprep.subr.bf16.mxu0 0
        %730 = vmatpush1.bf16.msra.mxu0 0
        %731 = vmatprep.subr.bf16.mxu0 0
        %732 = vmatpush1.bf16.msra.mxu0 0
        %733 = vmatprep.subr.bf16.mxu0 0
        %734 = vmatpush1.bf16.msra.mxu0 0
        %735 = vmatprep.subr.bf16.mxu0 0
        %736 = vmatpush1.bf16.msra.mxu0 0
        %737 = vmatprep.subr.bf16.mxu0 0
        %738 = vmatpush1.bf16.msra.mxu0 0
        %739 = vmatprep.subr.bf16.mxu0 0
        %740 = vmatpush1.bf16.msra.mxu0 0
        %741 = vmatprep.subr.bf16.mxu0 0
        %742 = vmatpush1.bf16.msra.mxu0 0
        %743 = vmatprep.subr.bf16.mxu0 0
        %744 = vmatpush1.bf16.msra.mxu0 0
        %745 = vmatprep.subr.bf16.mxu0 0
        %746 = vmatpush1.bf16.msra.mxu0 0
        %747 = vmatprep.subr.bf16.mxu0 0
        %748 = vmatpush1.bf16.msra.mxu0 0
        %749 = vmatprep.subr.bf16.mxu0 0
        %750 = vmatpush1.bf16.msra.mxu0 0
        %751 = vmatprep.subr.bf16.mxu0 0
        %752 = vmatpush1.bf16.msra.mxu0 0
        %753 = vmatprep.subr.bf16.mxu0 0
        %754 = vmatpush1.bf16.msra.mxu0 0
        %755 = vmatprep.subr.bf16.mxu0 0
        %756 = vmatpush1.bf16.msra.mxu0 0
        %757 = vmatprep.mubr.bf16.mxu0 0
        %758 = vmatmul.mubr.bf16.gmra.mrb[0].mxu0 %v674
        %v759 = vpop.f32.mrb[0].mxu0
        %v760 = vadd.f32 0.0, %v759
        %v761 = vpop.f32.mrb[0].mxu0
        %v762 = vpop.f32.mrb[0].mxu0
        %v763 = vadd.f32 0.0, %v762
        %v764 = vpop.f32.mrb[0].mxu0
        %765 = vmatprep.mubr.bf16.mxu0 0
        %766 = vmatmul.mubr.bf16.gmra.mrb[0].mxu0 %v677
        %v767 = vpop.f32.mrb[0].mxu0
        %v768 = vadd.f32 0.0, %v767
        %v769 = vpop.f32.mrb[0].mxu0
        %v770 = vpop.f32.mrb[0].mxu0
        %v771 = vadd.f32 0.0, %v770
        %v772 = vpop.f32.mrb[0].mxu0
        %773 = vmatprep.mubr.bf16.mxu0 0
        %774 = vmatmul.mubr.bf16.gmra.mrb[0].mxu0 %v680
        %v775 = vpop.f32.mrb[0].mxu0
        %v776 = vadd.f32 0.0, %v775
        %v777 = vpop.f32.mrb[0].mxu0
        %v778 = vpop.f32.mrb[0].mxu0
        %v779 = vadd.f32 0.0, %v778
        %v780 = vpop.f32.mrb[0].mxu0
        %781 = vmatprep.mubr.bf16.mxu0 0
        %782 = vmatmul.mubr.bf16.gmra.mrb[0].mxu0 %v683
        %v783 = vpop.f32.mrb[0].mxu0
        %v784 = vadd.f32 0.0, %v783
        %v785 = vpop.f32.mrb[0].mxu0
        %v786 = vpop.f32.mrb[0].mxu0
        %v787 = vadd.f32 0.0, %v786
        %v788 = vpop.f32.mrb[0].mxu0
        %789 = vmatprep.mubr.bf16.mxu0 0
        %790 = vmatmul.mubr.bf16.gmra.mrb[0].mxu0 %v686
        %v791 = vpop.f32.mrb[0].mxu0
        %v792 = vadd.f32 0.0, %v791
        %v793 = vpop.f32.mrb[0].mxu0
        %v794 = vpop.f32.mrb[0].mxu0
        %v795 = vadd.f32 0.0, %v794
        %v796 = vpop.f32.mrb[0].mxu0
        %797 = vmatprep.mubr.bf16.mxu0 0
        %798 = vmatmul.mubr.bf16.gmra.mrb[0].mxu0 %v689
        %v799 = vpop.f32.mrb[0].mxu0
        %v800 = vadd.f32 0.0, %v799
        %v801 = vpop.f32.mrb[0].mxu0
        %v802 = vpop.f32.mrb[0].mxu0
        %v803 = vadd.f32 0.0, %v802
        %v804 = vpop.f32.mrb[0].mxu0
        %805 = vmatprep.mubr.bf16.mxu0 0
        %806 = vmatmul.mubr.bf16.gmra.mrb[0].mxu0 %v692
        %v807 = vpop.f32.mrb[0].mxu0
        %v808 = vadd.f32 0.0, %v807
        %v809 = vpop.f32.mrb[0].mxu0
        %v810 = vpop.f32.mrb[0].mxu0
        %v811 = vadd.f32 0.0, %v810
        %v812 = vpop.f32.mrb[0].mxu0
        %813 = vmatprep.mubr.bf16.mxu0 0
        %814 = vmatmul.mubr.bf16.gmra.mrb[0].mxu0 %v695
        %v815 = vpop.f32.mrb[0].mxu0
        %v816 = vadd.f32 0.0, %v815
        %v817 = vpop.f32.mrb[0].mxu0
        %v818 = vpop.f32.mrb[0].mxu0
        %v819 = vadd.f32 0.0, %v818
        %v820 = vpop.f32.mrb[0].mxu0
        %821 = vmatprep.mubr.bf16.mxu0 0
        %822 = vmatmul.mubr.bf16.gmra.mrb[0].mxu0 %v698
        %v823 = vpop.f32.mrb[0].mxu0
        %v824 = vadd.f32 0.0, %v823
        %v825 = vpop.f32.mrb[0].mxu0
        %v826 = vpop.f32.mrb[0].mxu0
        %v827 = vadd.f32 0.0, %v826
        %v828 = vpop.f32.mrb[0].mxu0
        %829 = vmatprep.mubr.bf16.mxu0 0
        %830 = vmatmul.mubr.bf16.gmra.mrb[0].mxu0 %v701
        %v831 = vpop.f32.mrb[0].mxu0
        %v832 = vadd.f32 0.0, %v831
        %v833 = vpop.f32.mrb[0].mxu0
        %v834 = vpop.f32.mrb[0].mxu0
        %v835 = vadd.f32 0.0, %v834
        %v836 = vpop.f32.mrb[0].mxu0
        %837 = vmatprep.mubr.bf16.mxu0 0
        %838 = vmatmul.mubr.bf16.gmra.mrb[0].mxu0 %v704
        %v839 = vpop.f32.mrb[0].mxu0
        %v840 = vadd.f32 0.0, %v839
        %v841 = vpop.f32.mrb[0].mxu0
        %v842 = vpop.f32.mrb[0].mxu0
        %v843 = vadd.f32 0.0, %v842
        %v844 = vpop.f32.mrb[0].mxu0
        %845 = vmatprep.mubr.bf16.mxu0 0
        %846 = vmatmul.mubr.bf16.gmra.mrb[0].mxu0 %v707
        %v847 = vpop.f32.mrb[0].mxu0
        %v848 = vadd.f32 0.0, %v847
        %v849 = vpop.f32.mrb[0].mxu0
        %v850 = vpop.f32.mrb[0].mxu0
        %v851 = vadd.f32 0.0, %v850
        %v852 = vpop.f32.mrb[0].mxu0
        %853 = vmatprep.mubr.bf16.mxu0 0
        %854 = vmatmul.mubr.bf16.gmra.mrb[0].mxu0 %v710
        %v855 = vpop.f32.mrb[0].mxu0
        %v856 = vadd.f32 0.0, %v855
        %v857 = vpop.f32.mrb[0].mxu0
        %v858 = vpop.f32.mrb[0].mxu0
        %v859 = vadd.f32 0.0, %v858
        %v860 = vpop.f32.mrb[0].mxu0
        %861 = vmatprep.mubr.bf16.mxu0 0
        %862 = vmatmul.mubr.bf16.gmra.mrb[0].mxu0 %v713
        %v863 = vpop.f32.mrb[0].mxu0
        %v864 = vadd.f32 0.0, %v863
        %v865 = vpop.f32.mrb[0].mxu0
        %v866 = vpop.f32.mrb[0].mxu0
        %v867 = vadd.f32 0.0, %v866
        %v868 = vpop.f32.mrb[0].mxu0
        %869 = vmatprep.mubr.bf16.mxu0 0
        %870 = vmatmul.mubr.bf16.gmra.mrb[0].mxu0 %v716
        %v871 = vpop.f32.mrb[0].mxu0
        %v872 = vadd.f32 0.0, %v871
        %v873 = vpop.f32.mrb[0].mxu0
        %v874 = vpop.f32.mrb[0].mxu0
        %v875 = vadd.f32 0.0, %v874
        %v876 = vpop.f32.mrb[0].mxu0
        %877 = vmatprep.mubr.bf16.mxu0 0
        %878 = vmatmul.mubr.bf16.gmra.mrb[0].mxu0 %v719
        %v879 = vpop.f32.mrb[0].mxu0
        %v880 = vadd.f32 0.0, %v879
        %v881 = vpop.f32.mrb[0].mxu0
        %v882 = vpop.f32.mrb[0].mxu0
        %v883 = vadd.f32 0.0, %v882
        %v884 = vpop.f32.mrb[0].mxu0
        %885 = vdwg.mxu0
        %v918 = vunpack.c.l.b16 %v186
        %v919 = vunpack.c.l.b16 %v187
        %v920 = vunpack.c.l.b16 %v188
        %v921 = vunpack.c.l.b16 %v189
        %v922 = vunpack.c.l.b16 %v190
        %v923 = vunpack.c.l.b16 %v191
        %v924 = vunpack.c.l.b16 %v192
        %v925 = vunpack.c.l.b16 %v193
        %v926 = vunpack.c.l.b16 %v194
        %v927 = vunpack.c.l.b16 %v195
        %v928 = vunpack.c.l.b16 %v196
        %v929 = vunpack.c.l.b16 %v197
        %v930 = vunpack.c.l.b16 %v198
        %v931 = vunpack.c.l.b16 %v199
        %v932 = vunpack.c.l.b16 %v200
        %v933 = vunpack.c.l.b16 %v201
        %v934 = vunpack.c.l.b16 %v202
        %v935 = vunpack.c.l.b16 %v203
        %v936 = vunpack.c.l.b16 %v204
        %v937 = vunpack.c.l.b16 %v205
        %v938 = vunpack.c.l.b16 %v206
        %v939 = vunpack.c.l.b16 %v207
        %v940 = vunpack.c.l.b16 %v208
        %v941 = vunpack.c.l.b16 %v209
        %v942 = vunpack.c.l.b16 %v210
        %v943 = vunpack.c.l.b16 %v211
        %v944 = vunpack.c.l.b16 %v212
        %v945 = vunpack.c.l.b16 %v213
        %v946 = vunpack.c.l.b16 %v214
        %v947 = vunpack.c.l.b16 %v215
        %v948 = vunpack.c.l.b16 %v216
        %v949 = vunpack.c.l.b16 %v217
        %v950 = vpack.c.b16 %v919, %v918
        %v951 = vpack.c.b16 %v921, %v920
        %v952 = vpack.c.b16 %v923, %v922
        %v953 = vpack.c.b16 %v925, %v924
        %v954 = vpack.c.b16 %v927, %v926
        %v955 = vpack.c.b16 %v929, %v928
        %v956 = vpack.c.b16 %v931, %v930
        %v957 = vpack.c.b16 %v933, %v932
        %v958 = vpack.c.b16 %v935, %v934
        %v959 = vpack.c.b16 %v937, %v936
        %v960 = vpack.c.b16 %v939, %v938
        %v961 = vpack.c.b16 %v941, %v940
        %v962 = vpack.c.b16 %v943, %v942
        %v963 = vpack.c.b16 %v945, %v944
        %v964 = vpack.c.b16 %v947, %v946
        %v965 = vpack.c.b16 %v949, %v948
        %v967 = vsel %vm672, %v950, 0
        %v970 = vsel %vm672, %v951, 0
        %v973 = vsel %vm672, %v952, 0
        %v976 = vsel %vm672, %v953, 0
        %v979 = vsel %vm672, %v954, 0
        %v982 = vsel %vm672, %v955, 0
        %v985 = vsel %vm672, %v956, 0
        %v988 = vsel %vm672, %v957, 0
        %v991 = vsel %vm672, %v958, 0
        %v994 = vsel %vm672, %v959, 0
        %v997 = vsel %vm672, %v960, 0
        %v1000 = vsel %vm672, %v961, 0
        %v1003 = vsel %vm672, %v962, 0
        %v1006 = vsel %vm672, %v963, 0
        %v1009 = vsel %vm672, %v964, 0
        %v1012 = vsel %vm672, %v965, 0
        %v1015 = vsel %vm721, %v218, 0
        %1017 = vmatprep.subr.bf16.mxu0 0
        %1018 = vmatpush1.bf16.msra.mxu0 %v1015
        %1019 = vmatprep.subr.bf16.mxu0 0
        %1020 = vmatpush1.bf16.msra.mxu0 0
        %1021 = vmatprep.subr.bf16.mxu0 0
        %1022 = vmatpush1.bf16.msra.mxu0 0
        %1023 = vmatprep.subr.bf16.mxu0 0
        %1024 = vmatpush1.bf16.msra.mxu0 0
        %1025 = vmatprep.subr.bf16.mxu0 0
        %1026 = vmatpush1.bf16.msra.mxu0 0
        %1027 = vmatprep.subr.bf16.mxu0 0
        %1028 = vmatpush1.bf16.msra.mxu0 0
        %1029 = vmatprep.subr.bf16.mxu0 0
        %1030 = vmatpush1.bf16.msra.mxu0 0
        %1031 = vmatprep.subr.bf16.mxu0 0
        %1032 = vmatpush1.bf16.msra.mxu0 0
        %1033 = vmatprep.subr.bf16.mxu0 0
        %1034 = vmatpush1.bf16.msra.mxu0 0
        %1035 = vmatprep.subr.bf16.mxu0 0
        %1036 = vmatpush1.bf16.msra.mxu0 0
        %1037 = vmatprep.subr.bf16.mxu0 0
        %1038 = vmatpush1.bf16.msra.mxu0 0
        %1039 = vmatprep.subr.bf16.mxu0 0
        %1040 = vmatpush1.bf16.msra.mxu0 0
        %1041 = vmatprep.subr.bf16.mxu0 0
        %1042 = vmatpush1.bf16.msra.mxu0 0
        %1043 = vmatprep.subr.bf16.mxu0 0
        %1044 = vmatpush1.bf16.msra.mxu0 0
        %1045 = vmatprep.subr.bf16.mxu0 0
        %1046 = vmatpush1.bf16.msra.mxu0 0
        %1047 = vmatprep.subr.bf16.mxu0 0
        %1048 = vmatpush1.bf16.msra.mxu0 0
        %1049 = vmatprep.mubr.bf16.mxu0 0
        %1050 = vmatmul.mubr.bf16.gmra.mrb[0].mxu0 %v967
        %v1051 = vpop.f32.mrb[0].mxu0
        %v1052 = vadd.f32 %v760, %v1051
        %v1053 = vpop.f32.mrb[0].mxu0
        %v1054 = vpop.f32.mrb[0].mxu0
        %v1055 = vadd.f32 %v763, %v1054
        %v1056 = vpop.f32.mrb[0].mxu0
        %1057 = vmatprep.mubr.bf16.mxu0 0
        %1058 = vmatmul.mubr.bf16.gmra.mrb[0].mxu0 %v970
        %v1059 = vpop.f32.mrb[0].mxu0
        %v1060 = vadd.f32 %v768, %v1059
        %v1061 = vpop.f32.mrb[0].mxu0
        %v1062 = vpop.f32.mrb[0].mxu0
        %v1063 = vadd.f32 %v771, %v1062
        %v1064 = vpop.f32.mrb[0].mxu0
        %1065 = vmatprep.mubr.bf16.mxu0 0
        %1066 = vmatmul.mubr.bf16.gmra.mrb[0].mxu0 %v973
        %v1067 = vpop.f32.mrb[0].mxu0
        %v1068 = vadd.f32 %v776, %v1067
        %v1069 = vpop.f32.mrb[0].mxu0
        %v1070 = vpop.f32.mrb[0].mxu0
        %v1071 = vadd.f32 %v779, %v1070
        %v1072 = vpop.f32.mrb[0].mxu0
        %1073 = vmatprep.mubr.bf16.mxu0 0
        %1074 = vmatmul.mubr.bf16.gmra.mrb[0].mxu0 %v976
        %v1075 = vpop.f32.mrb[0].mxu0
        %v1076 = vadd.f32 %v784, %v1075
        %v1077 = vpop.f32.mrb[0].mxu0
        %v1078 = vpop.f32.mrb[0].mxu0
        %v1079 = vadd.f32 %v787, %v1078
        %v1080 = vpop.f32.mrb[0].mxu0
        %1081 = vmatprep.mubr.bf16.mxu0 0
        %1082 = vmatmul.mubr.bf16.gmra.mrb[0].mxu0 %v979
        %v1083 = vpop.f32.mrb[0].mxu0
        %v1084 = vadd.f32 %v792, %v1083
        %v1085 = vpop.f32.mrb[0].mxu0
        %v1086 = vpop.f32.mrb[0].mxu0
        %v1087 = vadd.f32 %v795, %v1086
        %v1088 = vpop.f32.mrb[0].mxu0
        %1089 = vmatprep.mubr.bf16.mxu0 0
        %1090 = vmatmul.mubr.bf16.gmra.mrb[0].mxu0 %v982
        %v1091 = vpop.f32.mrb[0].mxu0
        %v1092 = vadd.f32 %v800, %v1091
        %v1093 = vpop.f32.mrb[0].mxu0
        %v1094 = vpop.f32.mrb[0].mxu0
        %v1095 = vadd.f32 %v803, %v1094
        %v1096 = vpop.f32.mrb[0].mxu0
        %1097 = vmatprep.mubr.bf16.mxu0 0
        %1098 = vmatmul.mubr.bf16.gmra.mrb[0].mxu0 %v985
        %v1099 = vpop.f32.mrb[0].mxu0
        %v1100 = vadd.f32 %v808, %v1099
        %v1101 = vpop.f32.mrb[0].mxu0
        %v1102 = vpop.f32.mrb[0].mxu0
        %v1103 = vadd.f32 %v811, %v1102
        %v1104 = vpop.f32.mrb[0].mxu0
        %1105 = vmatprep.mubr.bf16.mxu0 0
        %1106 = vmatmul.mubr.bf16.gmra.mrb[0].mxu0 %v988
        %v1107 = vpop.f32.mrb[0].mxu0
        %v1108 = vadd.f32 %v816, %v1107
        %v1109 = vpop.f32.mrb[0].mxu0
        %v1110 = vpop.f32.mrb[0].mxu0
        %v1111 = vadd.f32 %v819, %v1110
        %v1112 = vpop.f32.mrb[0].mxu0
        %1113 = vmatprep.mubr.bf16.mxu0 0
        %1114 = vmatmul.mubr.bf16.gmra.mrb[0].mxu0 %v991
        %v1115 = vpop.f32.mrb[0].mxu0
        %v1116 = vadd.f32 %v824, %v1115
        %v1117 = vpop.f32.mrb[0].mxu0
        %v1118 = vpop.f32.mrb[0].mxu0
        %v1119 = vadd.f32 %v827, %v1118
        %v1120 = vpop.f32.mrb[0].mxu0
        %1121 = vmatprep.mubr.bf16.mxu0 0
        %1122 = vmatmul.mubr.bf16.gmra.mrb[0].mxu0 %v994
        %v1123 = vpop.f32.mrb[0].mxu0
        %v1124 = vadd.f32 %v832, %v1123
        %v1125 = vpop.f32.mrb[0].mxu0
        %v1126 = vpop.f32.mrb[0].mxu0
        %v1127 = vadd.f32 %v835, %v1126
        %v1128 = vpop.f32.mrb[0].mxu0
        %1129 = vmatprep.mubr.bf16.mxu0 0
        %1130 = vmatmul.mubr.bf16.gmra.mrb[0].mxu0 %v997
        %v1131 = vpop.f32.mrb[0].mxu0
        %v1132 = vadd.f32 %v840, %v1131
        %v1133 = vpop.f32.mrb[0].mxu0
        %v1134 = vpop.f32.mrb[0].mxu0
        %v1135 = vadd.f32 %v843, %v1134
        %v1136 = vpop.f32.mrb[0].mxu0
        %1137 = vmatprep.mubr.bf16.mxu0 0
        %1138 = vmatmul.mubr.bf16.gmra.mrb[0].mxu0 %v1000
        %v1139 = vpop.f32.mrb[0].mxu0
        %v1140 = vadd.f32 %v848, %v1139
        %v1141 = vpop.f32.mrb[0].mxu0
        %v1142 = vpop.f32.mrb[0].mxu0
        %v1143 = vadd.f32 %v851, %v1142
        %v1144 = vpop.f32.mrb[0].mxu0
        %1145 = vmatprep.mubr.bf16.mxu0 0
        %1146 = vmatmul.mubr.bf16.gmra.mrb[0].mxu0 %v1003
        %v1147 = vpop.f32.mrb[0].mxu0
        %v1148 = vadd.f32 %v856, %v1147
        %v1149 = vpop.f32.mrb[0].mxu0
        %v1150 = vpop.f32.mrb[0].mxu0
        %v1151 = vadd.f32 %v859, %v1150
        %v1152 = vpop.f32.mrb[0].mxu0
        %1153 = vmatprep.mubr.bf16.mxu0 0
        %1154 = vmatmul.mubr.bf16.gmra.mrb[0].mxu0 %v1006
        %v1155 = vpop.f32.mrb[0].mxu0
        %v1156 = vadd.f32 %v864, %v1155
        %v1157 = vpop.f32.mrb[0].mxu0
        %v1158 = vpop.f32.mrb[0].mxu0
        %v1159 = vadd.f32 %v867, %v1158
        %v1160 = vpop.f32.mrb[0].mxu0
        %1161 = vmatprep.mubr.bf16.mxu0 0
        %1162 = vmatmul.mubr.bf16.gmra.mrb[0].mxu0 %v1009
        %v1163 = vpop.f32.mrb[0].mxu0
        %v1164 = vadd.f32 %v872, %v1163
        %v1165 = vpop.f32.mrb[0].mxu0
        %v1166 = vpop.f32.mrb[0].mxu0
        %v1167 = vadd.f32 %v875, %v1166
        %v1168 = vpop.f32.mrb[0].mxu0
        %1169 = vmatprep.mubr.bf16.mxu0 0
        %1170 = vmatmul.mubr.bf16.gmra.mrb[0].mxu0 %v1012
        %v1171 = vpop.f32.mrb[0].mxu0
        %v1172 = vadd.f32 %v880, %v1171
        %v1173 = vpop.f32.mrb[0].mxu0
        %v1174 = vpop.f32.mrb[0].mxu0
        %v1175 = vadd.f32 %v883, %v1174
        %v1176 = vpop.f32.mrb[0].mxu0
        %1177 = vdwg.mxu0
        %v1178 = vld [vmem:[%s183] sm:$0xe]
        %v1179 = vld [vmem:[%s183 + $0xc] sm:$0xe]
        %v1180 = vld [vmem:[%s183 + $0x18] sm:$0xe]
        %v1181 = vld [vmem:[%s183 + $0x24] sm:$0xe]
        %v1182 = vld [vmem:[%s183 + $0x30] sm:$0xe]
        %v1183 = vld [vmem:[%s183 + $0x3c] sm:$0xe]
        %v1184 = vld [vmem:[%s183 + $0x48] sm:$0xe]
        %v1185 = vld [vmem:[%s183 + $0x54] sm:$0xe]
        %v1186 = vld [vmem:[%s183 + $0x60] sm:$0xe]
        %v1187 = vld [vmem:[%s183 + $0x6c] sm:$0xe]
        %v1188 = vld [vmem:[%s183 + $0x78] sm:$0xe]
        %v1189 = vld [vmem:[%s183 + $0x84] sm:$0xe]
        %v1190 = vld [vmem:[%s183 + $0x90] sm:$0xe]
        %v1191 = vld [vmem:[%s183 + $0x9c] sm:$0xe]
        %v1192 = vld [vmem:[%s183 + $0xa8] sm:$0xe]
        %v1193 = vld [vmem:[%s183 + $0xb4] sm:$0xe]
        %vm1226 = vcmask 1042432
        %vm1227 = vcmask 1046532
        %vm1228 = vmor %vm1226, %vm1227
        %v1229 = vrot.slane %v1178, 5
        %v1230 = vrot.slane %v1229, 4
        %v1231 = vrot.slane %v187, 5
        %v1232 = vsel %vm1228, %v1230, %v1231
        %v1233 = vrot.slane %v1231, 4
        %v1234 = vrot.slane %v219, 5
        %v1235 = vsel %vm1228, %v1233, %v1234
        %v1236 = vrot.slane %v1179, 5
        %v1237 = vrot.slane %v1236, 4
        %v1238 = vrot.slane %v189, 5
        %v1239 = vsel %vm1228, %v1237, %v1238
        %v1240 = vrot.slane %v1238, 4
        %v1241 = vrot.slane %v220, 5
        %v1242 = vsel %vm1228, %v1240, %v1241
        %v1243 = vrot.slane %v1180, 5
        %v1244 = vrot.slane %v1243, 4
        %v1245 = vrot.slane %v191, 5
        %v1246 = vsel %vm1228, %v1244, %v1245
        %v1247 = vrot.slane %v1245, 4
        %v1248 = vrot.slane %v221, 5
        %v1249 = vsel %vm1228, %v1247, %v1248
        %v1250 = vrot.slane %v1181, 5
        %v1251 = vrot.slane %v1250, 4
        %v1252 = vrot.slane %v193, 5
        %v1253 = vsel %vm1228, %v1251, %v1252
        %v1254 = vrot.slane %v1252, 4
        %v1255 = vrot.slane %v222, 5
        %v1256 = vsel %vm1228, %v1254, %v1255
        %v1257 = vrot.slane %v1182, 5
        %v1258 = vrot.slane %v1257, 4
        %v1259 = vrot.slane %v195, 5
        %v1260 = vsel %vm1228, %v1258, %v1259
        %v1261 = vrot.slane %v1259, 4
        %v1262 = vrot.slane %v223, 5
        %v1263 = vsel %vm1228, %v1261, %v1262
        %v1264 = vrot.slane %v1183, 5
        %v1265 = vrot.slane %v1264, 4
        %v1266 = vrot.slane %v197, 5
        %v1267 = vsel %vm1228, %v1265, %v1266
        %v1268 = vrot.slane %v1266, 4
        %v1269 = vrot.slane %v224, 5
        %v1270 = vsel %vm1228, %v1268, %v1269
        %v1271 = vrot.slane %v1184, 5
        %v1272 = vrot.slane %v1271, 4
        %v1273 = vrot.slane %v199, 5
        %v1274 = vsel %vm1228, %v1272, %v1273
        %v1275 = vrot.slane %v1273, 4
        %v1276 = vrot.slane %v225, 5
        %v1277 = vsel %vm1228, %v1275, %v1276
        %v1278 = vrot.slane %v1185, 5
        %v1279 = vrot.slane %v1278, 4
        %v1280 = vrot.slane %v201, 5
        %v1281 = vsel %vm1228, %v1279, %v1280
        %v1282 = vrot.slane %v1280, 4
        %v1283 = vrot.slane %v226, 5
        %v1284 = vsel %vm1228, %v1282, %v1283
        %v1285 = vrot.slane %v1186, 5
        %v1286 = vrot.slane %v1285, 4
        %v1287 = vrot.slane %v203, 5
        %v1288 = vsel %vm1228, %v1286, %v1287
        %v1289 = vrot.slane %v1287, 4
        %v1290 = vrot.slane %v227, 5
        %v1291 = vsel %vm1228, %v1289, %v1290
        %v1292 = vrot.slane %v1187, 5
        %v1293 = vrot.slane %v1292, 4
        %v1294 = vrot.slane %v205, 5
        %v1295 = vsel %vm1228, %v1293, %v1294
        %v1296 = vrot.slane %v1294, 4
        %v1297 = vrot.slane %v228, 5
        %v1298 = vsel %vm1228, %v1296, %v1297
        %v1299 = vrot.slane %v1188, 5
        %v1300 = vrot.slane %v1299, 4
        %v1301 = vrot.slane %v207, 5
        %v1302 = vsel %vm1228, %v1300, %v1301
        %v1303 = vrot.slane %v1301, 4
        %v1304 = vrot.slane %v229, 5
        %v1305 = vsel %vm1228, %v1303, %v1304
        %v1306 = vrot.slane %v1189, 5
        %v1307 = vrot.slane %v1306, 4
        %v1308 = vrot.slane %v209, 5
        %v1309 = vsel %vm1228, %v1307, %v1308
        %v1310 = vrot.slane %v1308, 4
        %v1311 = vrot.slane %v230, 5
        %v1312 = vsel %vm1228, %v1310, %v1311
        %v1313 = vrot.slane %v1190, 5
        %v1314 = vrot.slane %v1313, 4
        %v1315 = vrot.slane %v211, 5
        %v1316 = vsel %vm1228, %v1314, %v1315
        %v1317 = vrot.slane %v1315, 4
        %v1318 = vrot.slane %v231, 5
        %v1319 = vsel %vm1228, %v1317, %v1318
        %v1320 = vrot.slane %v1191, 5
        %v1321 = vrot.slane %v1320, 4
        %v1322 = vrot.slane %v213, 5
        %v1323 = vsel %vm1228, %v1321, %v1322
        %v1324 = vrot.slane %v1322, 4
        %v1325 = vrot.slane %v232, 5
        %v1326 = vsel %vm1228, %v1324, %v1325
        %v1327 = vrot.slane %v1192, 5
        %v1328 = vrot.slane %v1327, 4
        %v1329 = vrot.slane %v215, 5
        %v1330 = vsel %vm1228, %v1328, %v1329
        %v1331 = vrot.slane %v1329, 4
        %v1332 = vrot.slane %v233, 5
        %v1333 = vsel %vm1228, %v1331, %v1332
        %v1334 = vrot.slane %v1193, 5
        %v1335 = vrot.slane %v1334, 4
        %v1336 = vrot.slane %v217, 5
        %v1337 = vsel %vm1228, %v1335, %v1336
        %v1338 = vrot.slane %v1336, 4
        %v1339 = vrot.slane %v234, 5
        %v1340 = vsel %vm1228, %v1338, %v1339
        %s1341 = scalar_lea.vmem %s1, 4
        %v1342 = vld [vmem:[%s1341] sm:$0x3]
        %v1343 = vunpack.c.l.b16 %v1232
        %v1344 = vunpack.c.l.b16 %v1235
        %v1345 = vunpack.c.l.b16 %v1239
        %v1346 = vunpack.c.l.b16 %v1242
        %v1347 = vunpack.c.l.b16 %v1246
        %v1348 = vunpack.c.l.b16 %v1249
        %v1349 = vunpack.c.l.b16 %v1253
        %v1350 = vunpack.c.l.b16 %v1256
        %v1351 = vunpack.c.l.b16 %v1260
        %v1352 = vunpack.c.l.b16 %v1263
        %v1353 = vunpack.c.l.b16 %v1267
        %v1354 = vunpack.c.l.b16 %v1270
        %v1355 = vunpack.c.l.b16 %v1274
        %v1356 = vunpack.c.l.b16 %v1277
        %v1357 = vunpack.c.l.b16 %v1281
        %v1358 = vunpack.c.l.b16 %v1284
        %v1359 = vunpack.c.l.b16 %v1288
        %v1360 = vunpack.c.l.b16 %v1291
        %v1361 = vunpack.c.l.b16 %v1295
        %v1362 = vunpack.c.l.b16 %v1298
        %v1363 = vunpack.c.l.b16 %v1302
        %v1364 = vunpack.c.l.b16 %v1305
        %v1365 = vunpack.c.l.b16 %v1309
        %v1366 = vunpack.c.l.b16 %v1312
        %v1367 = vunpack.c.l.b16 %v1316
        %v1368 = vunpack.c.l.b16 %v1319
        %v1369 = vunpack.c.l.b16 %v1323
        %v1370 = vunpack.c.l.b16 %v1326
        %v1371 = vunpack.c.l.b16 %v1330
        %v1372 = vunpack.c.l.b16 %v1333
        %v1373 = vunpack.c.l.b16 %v1337
        %v1374 = vunpack.c.l.b16 %v1340
        %v1375 = vpack.c.b16 %v1344, %v1343
        %v1376 = vpack.c.b16 %v1346, %v1345
        %v1377 = vpack.c.b16 %v1348, %v1347
        %v1378 = vpack.c.b16 %v1350, %v1349
        %v1379 = vpack.c.b16 %v1352, %v1351
        %v1380 = vpack.c.b16 %v1354, %v1353
        %v1381 = vpack.c.b16 %v1356, %v1355
        %v1382 = vpack.c.b16 %v1358, %v1357
        %v1383 = vpack.c.b16 %v1360, %v1359
        %v1384 = vpack.c.b16 %v1362, %v1361
        %v1385 = vpack.c.b16 %v1364, %v1363
        %v1386 = vpack.c.b16 %v1366, %v1365
        %v1387 = vpack.c.b16 %v1368, %v1367
        %v1388 = vpack.c.b16 %v1370, %v1369
        %v1389 = vpack.c.b16 %v1372, %v1371
        %v1390 = vpack.c.b16 %v1374, %v1373
        %v1392 = vsel %vm672, %v1375, 0
        %v1395 = vsel %vm672, %v1376, 0
        %v1398 = vsel %vm672, %v1377, 0
        %v1401 = vsel %vm672, %v1378, 0
        %v1404 = vsel %vm672, %v1379, 0
        %v1407 = vsel %vm672, %v1380, 0
        %v1410 = vsel %vm672, %v1381, 0
        %v1413 = vsel %vm672, %v1382, 0
        %v1416 = vsel %vm672, %v1383, 0
        %v1419 = vsel %vm672, %v1384, 0
        %v1422 = vsel %vm672, %v1385, 0
        %v1425 = vsel %vm672, %v1386, 0
        %v1428 = vsel %vm672, %v1387, 0
        %v1431 = vsel %vm672, %v1388, 0
        %v1434 = vsel %vm672, %v1389, 0
        %v1437 = vsel %vm672, %v1390, 0
        %v1440 = vsel %vm721, %v1342, 0
        %1442 = vmatprep.subr.bf16.mxu0 0
        %1443 = vmatpush1.bf16.msra.mxu0 %v1440
        %1444 = vmatprep.subr.bf16.mxu0 0
        %1445 = vmatpush1.bf16.msra.mxu0 0
        %1446 = vmatprep.subr.bf16.mxu0 0
        %1447 = vmatpush1.bf16.msra.mxu0 0
        %1448 = vmatprep.subr.bf16.mxu0 0
        %1449 = vmatpush1.bf16.msra.mxu0 0
        %1450 = vmatprep.subr.bf16.mxu0 0
        %1451 = vmatpush1.bf16.msra.mxu0 0
        %1452 = vmatprep.subr.bf16.mxu0 0
        %1453 = vmatpush1.bf16.msra.mxu0 0
        %1454 = vmatprep.subr.bf16.mxu0 0
        %1455 = vmatpush1.bf16.msra.mxu0 0
        %1456 = vmatprep.subr.bf16.mxu0 0
        %1457 = vmatpush1.bf16.msra.mxu0 0
        %1458 = vmatprep.subr.bf16.mxu0 0
        %1459 = vmatpush1.bf16.msra.mxu0 0
        %1460 = vmatprep.subr.bf16.mxu0 0
        %1461 = vmatpush1.bf16.msra.mxu0 0
        %1462 = vmatprep.subr.bf16.mxu0 0
        %1463 = vmatpush1.bf16.msra.mxu0 0
        %1464 = vmatprep.subr.bf16.mxu0 0
        %1465 = vmatpush1.bf16.msra.mxu0 0
        %1466 = vmatprep.subr.bf16.mxu0 0
        %1467 = vmatpush1.bf16.msra.mxu0 0
        %1468 = vmatprep.subr.bf16.mxu0 0
        %1469 = vmatpush1.bf16.msra.mxu0 0
        %1470 = vmatprep.subr.bf16.mxu0 0
        %1471 = vmatpush1.bf16.msra.mxu0 0
        %1472 = vmatprep.subr.bf16.mxu0 0
        %1473 = vmatpush1.bf16.msra.mxu0 0
        %1474 = vmatprep.mubr.bf16.mxu0 0
        %1475 = vmatmul.mubr.bf16.gmra.mrb[0].mxu0 %v1392
        %v1476 = vpop.f32.mrb[0].mxu0
        %v1477 = vadd.f32 0.0, %v1476
        %v1478 = vpop.f32.mrb[0].mxu0
        %v1479 = vpop.f32.mrb[0].mxu0
        %v1480 = vadd.f32 0.0, %v1479
        %v1481 = vpop.f32.mrb[0].mxu0
        %1482 = vmatprep.mubr.bf16.mxu0 0
        %1483 = vmatmul.mubr.bf16.gmra.mrb[0].mxu0 %v1395
        %v1484 = vpop.f32.mrb[0].mxu0
        %v1485 = vadd.f32 0.0, %v1484
        %v1486 = vpop.f32.mrb[0].mxu0
        %v1487 = vpop.f32.mrb[0].mxu0
        %v1488 = vadd.f32 0.0, %v1487
        %v1489 = vpop.f32.mrb[0].mxu0
        %1490 = vmatprep.mubr.bf16.mxu0 0
        %1491 = vmatmul.mubr.bf16.gmra.mrb[0].mxu0 %v1398
        %v1492 = vpop.f32.mrb[0].mxu0
        %v1493 = vadd.f32 0.0, %v1492
        %v1494 = vpop.f32.mrb[0].mxu0
        %v1495 = vpop.f32.mrb[0].mxu0
        %v1496 = vadd.f32 0.0, %v1495
        %v1497 = vpop.f32.mrb[0].mxu0
        %1498 = vmatprep.mubr.bf16.mxu0 0
        %1499 = vmatmul.mubr.bf16.gmra.mrb[0].mxu0 %v1401
        %v1500 = vpop.f32.mrb[0].mxu0
        %v1501 = vadd.f32 0.0, %v1500
        %v1502 = vpop.f32.mrb[0].mxu0
        %v1503 = vpop.f32.mrb[0].mxu0
        %v1504 = vadd.f32 0.0, %v1503
        %v1505 = vpop.f32.mrb[0].mxu0
        %1506 = vmatprep.mubr.bf16.mxu0 0
        %1507 = vmatmul.mubr.bf16.gmra.mrb[0].mxu0 %v1404
        %v1508 = vpop.f32.mrb[0].mxu0
        %v1509 = vadd.f32 0.0, %v1508
        %v1510 = vpop.f32.mrb[0].mxu0
        %v1511 = vpop.f32.mrb[0].mxu0
        %v1512 = vadd.f32 0.0, %v1511
        %v1513 = vpop.f32.mrb[0].mxu0
        %1514 = vmatprep.mubr.bf16.mxu0 0
        %1515 = vmatmul.mubr.bf16.gmra.mrb[0].mxu0 %v1407
        %v1516 = vpop.f32.mrb[0].mxu0
        %v1517 = vadd.f32 0.0, %v1516
        %v1518 = vpop.f32.mrb[0].mxu0
        %v1519 = vpop.f32.mrb[0].mxu0
        %v1520 = vadd.f32 0.0, %v1519
        %v1521 = vpop.f32.mrb[0].mxu0
        %1522 = vmatprep.mubr.bf16.mxu0 0
        %1523 = vmatmul.mubr.bf16.gmra.mrb[0].mxu0 %v1410
        %v1524 = vpop.f32.mrb[0].mxu0
        %v1525 = vadd.f32 0.0, %v1524
        %v1526 = vpop.f32.mrb[0].mxu0
        %v1527 = vpop.f32.mrb[0].mxu0
        %v1528 = vadd.f32 0.0, %v1527
        %v1529 = vpop.f32.mrb[0].mxu0
        %1530 = vmatprep.mubr.bf16.mxu0 0
        %1531 = vmatmul.mubr.bf16.gmra.mrb[0].mxu0 %v1413
        %v1532 = vpop.f32.mrb[0].mxu0
        %v1533 = vadd.f32 0.0, %v1532
        %v1534 = vpop.f32.mrb[0].mxu0
        %v1535 = vpop.f32.mrb[0].mxu0
        %v1536 = vadd.f32 0.0, %v1535
        %v1537 = vpop.f32.mrb[0].mxu0
        %1538 = vmatprep.mubr.bf16.mxu0 0
        %1539 = vmatmul.mubr.bf16.gmra.mrb[0].mxu0 %v1416
        %v1540 = vpop.f32.mrb[0].mxu0
        %v1541 = vadd.f32 0.0, %v1540
        %v1542 = vpop.f32.mrb[0].mxu0
        %v1543 = vpop.f32.mrb[0].mxu0
        %v1544 = vadd.f32 0.0, %v1543
        %v1545 = vpop.f32.mrb[0].mxu0
        %1546 = vmatprep.mubr.bf16.mxu0 0
        %1547 = vmatmul.mubr.bf16.gmra.mrb[0].mxu0 %v1419
        %v1548 = vpop.f32.mrb[0].mxu0
        %v1549 = vadd.f32 0.0, %v1548
        %v1550 = vpop.f32.mrb[0].mxu0
        %v1551 = vpop.f32.mrb[0].mxu0
        %v1552 = vadd.f32 0.0, %v1551
        %v1553 = vpop.f32.mrb[0].mxu0
        %1554 = vmatprep.mubr.bf16.mxu0 0
        %1555 = vmatmul.mubr.bf16.gmra.mrb[0].mxu0 %v1422
        %v1556 = vpop.f32.mrb[0].mxu0
        %v1557 = vadd.f32 0.0, %v1556
        %v1558 = vpop.f32.mrb[0].mxu0
        %v1559 = vpop.f32.mrb[0].mxu0
        %v1560 = vadd.f32 0.0, %v1559
        %v1561 = vpop.f32.mrb[0].mxu0
        %1562 = vmatprep.mubr.bf16.mxu0 0
        %1563 = vmatmul.mubr.bf16.gmra.mrb[0].mxu0 %v1425
        %v1564 = vpop.f32.mrb[0].mxu0
        %v1565 = vadd.f32 0.0, %v1564
        %v1566 = vpop.f32.mrb[0].mxu0
        %v1567 = vpop.f32.mrb[0].mxu0
        %v1568 = vadd.f32 0.0, %v1567
        %v1569 = vpop.f32.mrb[0].mxu0
        %1570 = vmatprep.mubr.bf16.mxu0 0
        %1571 = vmatmul.mubr.bf16.gmra.mrb[0].mxu0 %v1428
        %v1572 = vpop.f32.mrb[0].mxu0
        %v1573 = vadd.f32 0.0, %v1572
        %v1574 = vpop.f32.mrb[0].mxu0
        %v1575 = vpop.f32.mrb[0].mxu0
        %v1576 = vadd.f32 0.0, %v1575
        %v1577 = vpop.f32.mrb[0].mxu0
        %1578 = vmatprep.mubr.bf16.mxu0 0
        %1579 = vmatmul.mubr.bf16.gmra.mrb[0].mxu0 %v1431
        %v1580 = vpop.f32.mrb[0].mxu0
        %v1581 = vadd.f32 0.0, %v1580
        %v1582 = vpop.f32.mrb[0].mxu0
        %v1583 = vpop.f32.mrb[0].mxu0
        %v1584 = vadd.f32 0.0, %v1583
        %v1585 = vpop.f32.mrb[0].mxu0
        %1586 = vmatprep.mubr.bf16.mxu0 0
        %1587 = vmatmul.mubr.bf16.gmra.mrb[0].mxu0 %v1434
        %v1588 = vpop.f32.mrb[0].mxu0
        %v1589 = vadd.f32 0.0, %v1588
        %v1590 = vpop.f32.mrb[0].mxu0
        %v1591 = vpop.f32.mrb[0].mxu0
        %v1592 = vadd.f32 0.0, %v1591
        %v1593 = vpop.f32.mrb[0].mxu0
        %1594 = vmatprep.mubr.bf16.mxu0 0
        %1595 = vmatmul.mubr.bf16.gmra.mrb[0].mxu0 %v1437
        %v1596 = vpop.f32.mrb[0].mxu0
        %v1597 = vadd.f32 0.0, %v1596
        %v1598 = vpop.f32.mrb[0].mxu0
        %v1599 = vpop.f32.mrb[0].mxu0
        %v1600 = vadd.f32 0.0, %v1599
        %v1601 = vpop.f32.mrb[0].mxu0
        %1602 = vdwg.mxu0
        %v1603 = vadd.f32 %v1052, %v1477
        %v1604 = vadd.f32 %v1055, %v1480
        %v1605 = vadd.f32 %v1060, %v1485
        %v1606 = vadd.f32 %v1063, %v1488
        %v1607 = vadd.f32 %v1068, %v1493
        %v1608 = vadd.f32 %v1071, %v1496
        %v1609 = vadd.f32 %v1076, %v1501
        %v1610 = vadd.f32 %v1079, %v1504
        %v1611 = vadd.f32 %v1084, %v1509
        %v1612 = vadd.f32 %v1087, %v1512
        %v1613 = vadd.f32 %v1092, %v1517
        %v1614 = vadd.f32 %v1095, %v1520
        %v1615 = vadd.f32 %v1100, %v1525
        %v1616 = vadd.f32 %v1103, %v1528
        %v1617 = vadd.f32 %v1108, %v1533
        %v1618 = vadd.f32 %v1111, %v1536
        %v1619 = vadd.f32 %v1116, %v1541
        %v1620 = vadd.f32 %v1119, %v1544
        %v1621 = vadd.f32 %v1124, %v1549
        %v1622 = vadd.f32 %v1127, %v1552
        %v1623 = vadd.f32 %v1132, %v1557
        %v1624 = vadd.f32 %v1135, %v1560
        %v1625 = vadd.f32 %v1140, %v1565
        %v1626 = vadd.f32 %v1143, %v1568
        %v1627 = vadd.f32 %v1148, %v1573
        %v1628 = vadd.f32 %v1151, %v1576
        %v1629 = vadd.f32 %v1156, %v1581
        %v1630 = vadd.f32 %v1159, %v1584
        %v1631 = vadd.f32 %v1164, %v1589
        %v1632 = vadd.f32 %v1167, %v1592
        %v1633 = vadd.f32 %v1172, %v1597
        %v1634 = vadd.f32 %v1175, %v1600
        %vm1635 = vcmask 64512
        %v1636 = vsel %vm1635, %v1603, 0.0
        %v1637 = vsel %vm1635, %v1604, 0.0
        %v1638 = vadd.f32 %v1636, %v1637
        %v1639 = vsel %vm1635, %v1605, 0.0
        %v1640 = vadd.f32 %v1638, %v1639
        %v1641 = vsel %vm1635, %v1606, 0.0
        %v1642 = vadd.f32 %v1640, %v1641
        %v1643 = vsel %vm1635, %v1607, 0.0
        %v1644 = vadd.f32 %v1642, %v1643
        %v1645 = vsel %vm1635, %v1608, 0.0
        %v1646 = vadd.f32 %v1644, %v1645
        %v1647 = vsel %vm1635, %v1609, 0.0
        %v1648 = vadd.f32 %v1646, %v1647
        %v1649 = vsel %vm1635, %v1610, 0.0
        %v1650 = vadd.f32 %v1648, %v1649
        %v1651 = vsel %vm1635, %v1611, 0.0
        %v1652 = vadd.f32 %v1650, %v1651
        %v1653 = vsel %vm1635, %v1612, 0.0
        %v1654 = vadd.f32 %v1652, %v1653
        %v1655 = vsel %vm1635, %v1613, 0.0
        %v1656 = vadd.f32 %v1654, %v1655
        %v1657 = vsel %vm1635, %v1614, 0.0
        %v1658 = vadd.f32 %v1656, %v1657
        %v1659 = vsel %vm1635, %v1615, 0.0
        %v1660 = vadd.f32 %v1658, %v1659
        %v1661 = vsel %vm1635, %v1616, 0.0
        %v1662 = vadd.f32 %v1660, %v1661
        %v1663 = vsel %vm1635, %v1617, 0.0
        %v1664 = vadd.f32 %v1662, %v1663
        %v1665 = vsel %vm1635, %v1618, 0.0
        %v1666 = vadd.f32 %v1664, %v1665
        %v1667 = vsel %vm1635, %v1619, 0.0
        %v1668 = vadd.f32 %v1666, %v1667
        %v1669 = vsel %vm1635, %v1620, 0.0
        %v1670 = vadd.f32 %v1668, %v1669
        %v1671 = vsel %vm1635, %v1621, 0.0
        %v1672 = vadd.f32 %v1670, %v1671
        %v1673 = vsel %vm1635, %v1622, 0.0
        %v1674 = vadd.f32 %v1672, %v1673
        %v1675 = vsel %vm1635, %v1623, 0.0
        %v1676 = vadd.f32 %v1674, %v1675
        %v1677 = vsel %vm1635, %v1624, 0.0
        %v1678 = vadd.f32 %v1676, %v1677
        %v1679 = vsel %vm1635, %v1625, 0.0
        %v1680 = vadd.f32 %v1678, %v1679
        %v1681 = vsel %vm1635, %v1626, 0.0
        %v1682 = vadd.f32 %v1680, %v1681
        %v1683 = vsel %vm1635, %v1627, 0.0
        %v1684 = vadd.f32 %v1682, %v1683
        %v1685 = vsel %vm1635, %v1628, 0.0
        %v1686 = vadd.f32 %v1684, %v1685
        %v1687 = vsel %vm1635, %v1629, 0.0
        %v1688 = vadd.f32 %v1686, %v1687
        %v1689 = vsel %vm1635, %v1630, 0.0
        %v1690 = vadd.f32 %v1688, %v1689
        %v1691 = vsel %vm1635, %v1631, 0.0
        %v1692 = vadd.f32 %v1690, %v1691
        %v1693 = vsel %vm1635, %v1632, 0.0
        %v1694 = vadd.f32 %v1692, %v1693
        %v1695 = vsel %vm1635, %v1633, 0.0
        %v1696 = vadd.f32 %v1694, %v1695
        %v1697 = vsel %vm1635, %v1634, 0.0
        %v1698 = vadd.f32 %v1696, %v1697
        %v1699 = vrot.slane %v1698, 4
        %v1700 = vadd.f32 %v1698, %v1699
        %v1701 = vrot.slane %v1700, 2
        %v1702 = vadd.f32 %v1700, %v1701
        %v1703 = vrot.slane %v1702, 1
        %v1704 = vadd.f32 %v1702, %v1703
        %v1705 = vmul.f32 %v1704, 0.00390625
        %v1706 = vsub.f32 %v1603, %v1705
        %v1707 = vsub.f32 %v1604, %v1705
        %v1708 = vsub.f32 %v1605, %v1705
        %v1709 = vsub.f32 %v1606, %v1705
        %v1710 = vsub.f32 %v1607, %v1705
        %v1711 = vsub.f32 %v1608, %v1705
        %v1712 = vsub.f32 %v1609, %v1705
        %v1713 = vsub.f32 %v1610, %v1705
        %v1714 = vsub.f32 %v1611, %v1705
        %v1715 = vsub.f32 %v1612, %v1705
        %v1716 = vsub.f32 %v1613, %v1705
        %v1717 = vsub.f32 %v1614, %v1705
        %v1718 = vsub.f32 %v1615, %v1705
        %v1719 = vsub.f32 %v1616, %v1705
        %v1720 = vsub.f32 %v1617, %v1705
        %v1721 = vsub.f32 %v1618, %v1705
        %v1722 = vsub.f32 %v1619, %v1705
        %v1723 = vsub.f32 %v1620, %v1705
        %v1724 = vsub.f32 %v1621, %v1705
        %v1725 = vsub.f32 %v1622, %v1705
        %v1726 = vsub.f32 %v1623, %v1705
        %v1727 = vsub.f32 %v1624, %v1705
        %v1728 = vsub.f32 %v1625, %v1705
        %v1729 = vsub.f32 %v1626, %v1705
        %v1730 = vsub.f32 %v1627, %v1705
        %v1731 = vsub.f32 %v1628, %v1705
        %v1732 = vsub.f32 %v1629, %v1705
        %v1733 = vsub.f32 %v1630, %v1705
        %v1734 = vsub.f32 %v1631, %v1705
        %v1735 = vsub.f32 %v1632, %v1705
        %v1736 = vsub.f32 %v1633, %v1705
        %v1737 = vsub.f32 %v1634, %v1705
        %v1738 = vmul.f32 %v1706, %v1706
        %v1739 = vmul.f32 %v1707, %v1707
        %v1740 = vmul.f32 %v1708, %v1708
        %v1741 = vmul.f32 %v1709, %v1709
        %v1742 = vmul.f32 %v1710, %v1710
        %v1743 = vmul.f32 %v1711, %v1711
        %v1744 = vmul.f32 %v1712, %v1712
        %v1745 = vmul.f32 %v1713, %v1713
        %v1746 = vmul.f32 %v1714, %v1714
        %v1747 = vmul.f32 %v1715, %v1715
        %v1748 = vmul.f32 %v1716, %v1716
        %v1749 = vmul.f32 %v1717, %v1717
        %v1750 = vmul.f32 %v1718, %v1718
        %v1751 = vmul.f32 %v1719, %v1719
        %v1752 = vmul.f32 %v1720, %v1720
        %v1753 = vmul.f32 %v1721, %v1721
        %v1754 = vmul.f32 %v1722, %v1722
        %v1755 = vmul.f32 %v1723, %v1723
        %v1756 = vmul.f32 %v1724, %v1724
        %v1757 = vmul.f32 %v1725, %v1725
        %v1758 = vmul.f32 %v1726, %v1726
        %v1759 = vmul.f32 %v1727, %v1727
        %v1760 = vmul.f32 %v1728, %v1728
        %v1761 = vmul.f32 %v1729, %v1729
        %v1762 = vmul.f32 %v1730, %v1730
        %v1763 = vmul.f32 %v1731, %v1731
        %v1764 = vmul.f32 %v1732, %v1732
        %v1765 = vmul.f32 %v1733, %v1733
        %v1766 = vmul.f32 %v1734, %v1734
        %v1767 = vmul.f32 %v1735, %v1735
        %v1768 = vmul.f32 %v1736, %v1736
        %v1769 = vmul.f32 %v1737, %v1737
        %v1770 = vsel %vm1635, %v1738, 0.0
        %v1771 = vsel %vm1635, %v1739, 0.0
        %v1772 = vadd.f32 %v1770, %v1771
        %v1773 = vsel %vm1635, %v1740, 0.0
        %v1774 = vadd.f32 %v1772, %v1773
        %v1775 = vsel %vm1635, %v1741, 0.0
        %v1776 = vadd.f32 %v1774, %v1775
        %v1777 = vsel %vm1635, %v1742, 0.0
        %v1778 = vadd.f32 %v1776, %v1777
        %v1779 = vsel %vm1635, %v1743, 0.0
        %v1780 = vadd.f32 %v1778, %v1779
        %v1781 = vsel %vm1635, %v1744, 0.0
        %v1782 = vadd.f32 %v1780, %v1781
        %v1783 = vsel %vm1635, %v1745, 0.0
        %v1784 = vadd.f32 %v1782, %v1783
        %v1785 = vsel %vm1635, %v1746, 0.0
        %v1786 = vadd.f32 %v1784, %v1785
        %v1787 = vsel %vm1635, %v1747, 0.0
        %v1788 = vadd.f32 %v1786, %v1787
        %v1789 = vsel %vm1635, %v1748, 0.0
        %v1790 = vadd.f32 %v1788, %v1789
        %v1791 = vsel %vm1635, %v1749, 0.0
        %v1792 = vadd.f32 %v1790, %v1791
        %v1793 = vsel %vm1635, %v1750, 0.0
        %v1794 = vadd.f32 %v1792, %v1793
        %v1795 = vsel %vm1635, %v1751, 0.0
        %v1796 = vadd.f32 %v1794, %v1795
        %v1797 = vsel %vm1635, %v1752, 0.0
        %v1798 = vadd.f32 %v1796, %v1797
        %v1799 = vsel %vm1635, %v1753, 0.0
        %v1800 = vadd.f32 %v1798, %v1799
        %v1801 = vsel %vm1635, %v1754, 0.0
        %v1802 = vadd.f32 %v1800, %v1801
        %v1803 = vsel %vm1635, %v1755, 0.0
        %v1804 = vadd.f32 %v1802, %v1803
        %v1805 = vsel %vm1635, %v1756, 0.0
        %v1806 = vadd.f32 %v1804, %v1805
        %v1807 = vsel %vm1635, %v1757, 0.0
        %v1808 = vadd.f32 %v1806, %v1807
        %v1809 = vsel %vm1635, %v1758, 0.0
        %v1810 = vadd.f32 %v1808, %v1809
        %v1811 = vsel %vm1635, %v1759, 0.0
        %v1812 = vadd.f32 %v1810, %v1811
        %v1813 = vsel %vm1635, %v1760, 0.0
        %v1814 = vadd.f32 %v1812, %v1813
        %v1815 = vsel %vm1635, %v1761, 0.0
        %v1816 = vadd.f32 %v1814, %v1815
        %v1817 = vsel %vm1635, %v1762, 0.0
        %v1818 = vadd.f32 %v1816, %v1817
        %v1819 = vsel %vm1635, %v1763, 0.0
        %v1820 = vadd.f32 %v1818, %v1819
        %v1821 = vsel %vm1635, %v1764, 0.0
        %v1822 = vadd.f32 %v1820, %v1821
        %v1823 = vsel %vm1635, %v1765, 0.0
        %v1824 = vadd.f32 %v1822, %v1823
        %v1825 = vsel %vm1635, %v1766, 0.0
        %v1826 = vadd.f32 %v1824, %v1825
        %v1827 = vsel %vm1635, %v1767, 0.0
        %v1828 = vadd.f32 %v1826, %v1827
        %v1829 = vsel %vm1635, %v1768, 0.0
        %v1830 = vadd.f32 %v1828, %v1829
        %v1831 = vsel %vm1635, %v1769, 0.0
        %v1832 = vadd.f32 %v1830, %v1831
        %v1833 = vrot.slane %v1832, 4
        %v1834 = vadd.f32 %v1832, %v1833
        %v1835 = vrot.slane %v1834, 2
        %v1836 = vadd.f32 %v1834, %v1835
        %v1837 = vrot.slane %v1836, 1
        %v1838 = vadd.f32 %v1836, %v1837
        %1839 = vst.msk [vmem:[%s170] sm:$0xff] %vm1635, %v1704
        %1840 = vst.msk [vmem:[%s177] sm:$0xff] %vm1635, %v1838
        %s1841 = sand.u32 %s76, 1
        %s1842 = scalar_lea.sflag [#allocation3], %s1841
        %s1843 = sand.u32 %s76, 1
        %s1844 = smul.addr %s1843, 8
        %s1845 = scalar_lea.vmem [#allocation2], %s1844
        %s1846 = sand.u32 %s102, 1
        %s1847 = scalar_lea.sflag [#allocation5], %s1846
        %s1848 = sand.u32 %s102, 1
        %s1849 = smul.addr %s1848, 8
        %s1850 = scalar_lea.vmem [#allocation4], %s1849
        // Predicated region
        $region29: #{tpu_custom_call.1} parent=27 // pred_check
          %p1851 = pneg %p86
        $region30: #{tpu_custom_call.1} parent=27 // pred_check_branch
          %1853 = sbr.rel (%p1851) target = $region32
        $region31: #{tpu_custom_call.1} parent=27 // pred_region
          %s1855 = ssub.s32 128, 128
          %1856 = vsyncadd %s1842, %s1855
          %s1857 = smul.addr %s21, 128
          %s1858 = scalar_lea.hbm %s2, %s1857
          %s1860 = sshll.u32 %s1845, 4
          %s1861 = int_to_ptr.vmem [resolvable:$true] %s1860
          %1863 = dma.vmem_to_hbm [thread:$0]  %s1861, 128, %s1858, %s1842
        $region32: #{tpu_custom_call.1} parent=27 // pred_fallthru
          _
        // Predicated region
        $region33: #{tpu_custom_call.1} parent=27 // pred_check
          %p1864 = pneg %p112
        $region34: #{tpu_custom_call.1} parent=27 // pred_check_branch
          %1866 = sbr.rel (%p1864) target = $region36
        $region35: #{tpu_custom_call.1} parent=27 // pred_region
          %s1868 = ssub.s32 128, 128
          %1869 = vsyncadd %s1847, %s1868
          %s1870 = smul.addr %s21, 128
          %s1871 = scalar_lea.hbm %s3, %s1870
          %s1873 = sshll.u32 %s1850, 4
          %s1874 = int_to_ptr.vmem [resolvable:$true] %s1873
          %1876 = dma.vmem_to_hbm [thread:$0]  %s1874, 128, %s1871, %s1847
        $region36: #{tpu_custom_call.1} parent=27 // pred_fallthru
          _
      $region28: #{tpu_custom_call.1} parent=5 // pred_fallthru
        _
      %p1877 = scmp.le.s32.totalorder 2, %s16
      // Predicated region
      $region37: #{tpu_custom_call.1} parent=5 // pred_check
        %p1878 = pneg %p1877
      $region38: #{tpu_custom_call.1} parent=5 // pred_check_branch
        %1880 = sbr.rel (%p1878) target = $region40
      $region39: #{tpu_custom_call.1} parent=5 // pred_region
        %s1881 = ssub.s32 %s16, 2
        // Predicated region
        $region41: #{tpu_custom_call.1} parent=39 // pred_check
          %p1882 = pneg %p92
        $region42: #{tpu_custom_call.1} parent=39 // pred_check_branch
          %1884 = sbr.rel (%p1882) target = $region44
        $region43: #{tpu_custom_call.1} parent=39 // pred_region
          %s1885 = sand.u32 %s77, 1
          %s1886 = scalar_lea.sflag [#allocation3], %s1885
          %s1887 = sand.u32 %s77, 1
          %s1888 = smul.addr %s1887, 8
          %s1889 = scalar_lea.vmem [#allocation2], %s1888
          %1890 = dma.done %s1886, 128
        $region44: #{tpu_custom_call.1} parent=39 // pred_fallthru
          _
        // Predicated region
        $region45: #{tpu_custom_call.1} parent=39 // pred_check
          %p1891 = pneg %p118
        $region46: #{tpu_custom_call.1} parent=39 // pred_check_branch
          %1893 = sbr.rel (%p1891) target = $region48
        $region47: #{tpu_custom_call.1} parent=39 // pred_region
          %s1894 = sand.u32 %s103, 1
          %s1895 = scalar_lea.sflag [#allocation5], %s1894
          %s1896 = sand.u32 %s103, 1
          %s1897 = smul.addr %s1896, 8
          %s1898 = scalar_lea.vmem [#allocation4], %s1897
          %1899 = dma.done %s1895, 128
        $region48: #{tpu_custom_call.1} parent=39 // pred_fallthru
          _
      $region40: #{tpu_custom_call.1} parent=5 // pred_fallthru
        _
    $region6: #{tpu_custom_call.1} parent=1 // loop_footer
      %s20 = sadd.s32 1, %s16
    $region7: #{tpu_custom_call.1} parent=1 // loop_footer_branch
      %15 = sbr.rel target = $region3
    $region8: #{tpu_custom_call.1} parent=1 // loop_exit
      _
    %1900 = vsyncpa [#allocation3], 1
    %s1901 = scalar_lea.sflag [#allocation3], 1
    %1902 = vsyncpa %s1901, 1
    %1903 = vsyncpa [#allocation5], 1
    %s1904 = scalar_lea.sflag [#allocation5], 1
    %1905 = vsyncpa %s1904, 1

</llo_original>
